<compile_context>
chip_gen: v7x
topology: tpu7x:2x2x1
jax: 0.10.0
libtpu: 0.0.40
codegen_flags: <defaults>
</compile_context>

<pallas_src>
import functools
import math
from typing import NamedTuple

import jax
import jax.numpy as jnp
from jax import lax
from jax.experimental import pallas as pl
from jax.experimental.pallas import tpu as pltpu

_LANE = 128


def _round_up(x, m):
    return ((x + m - 1) // m) * m


def _sublane_align(dtype):
    size = jnp.dtype(dtype).itemsize
    if size >= 4:
        return 8
    if size == 2:
        return 16
    return 32


def _vmem_budget():
    """Returns (tile-selection budget, scoped vmem limit) in bytes."""
    kind = ""
    try:
        kind = jax.devices()[0].device_kind.lower()
    except Exception:  # pragma: no cover - defensive
        pass
    if "v7" in kind:
        # v7x: 64 MiB VMEM per TensorCore -> keep tiles modest, moderate limit.
        return 36 * 1024 * 1024, 48 * 1024 * 1024
    if ("v5" in kind) or ("v6" in kind):
        # 128 MiB physical VMEM -> big tiles, generous scoped limit.
        return 56 * 1024 * 1024, 96 * 1024 * 1024
    # Unknown hardware: stay within the 32 MiB scoped default.
    return 24 * 1024 * 1024, 32 * 1024 * 1024


def _choose_tile(dim, max_tile, align):
    """Pick a tile size (multiple of `align`, <= max_tile) minimizing padding."""
    full = _round_up(dim, align)
    if full <= max_tile:
        return full
    candidates = [c for c in (128, 256, 384, 512, 640, 768, 896, 1024)
                  if c % align == 0 and c <= max_tile]
    if not candidates:
        candidates = [max(align, (max_tile // align) * align)]
    best, best_pad = candidates[0], _round_up(dim, candidates[0])
    for c in candidates[1:]:
        pad = _round_up(dim, c)
        if pad < best_pad or (pad == best_pad and c > best):
            best, best_pad = c, pad
    return best


def _est_vmem_bytes(tm, tn, tk, multi_k, in_size, out_size):
    """Rough per-kernel VMEM footprint (double-buffered blocks + temporaries)."""
    total = 2 * tm * tk * in_size            # x block
    total += 2 * tk * (3 * tn) * in_size     # [wr|wg] + wb blocks
    total += 2 * (3 * tn) * in_size          # biases (tiny)
    total += 2 * tm * tn * out_size          # output block
    total += tm * tk * in_size               # x*x temporary
    total += tm * (3 * tn) * 4               # f32 dot results
    if multi_k:
        total += tm * (3 * tn) * 4           # f32 accumulators
    return total


# ----------------------------------------------------------------------------
# Kernels
# ----------------------------------------------------------------------------

def _quadratic_kernel_single(x_ref, wrg_ref, wb_ref, brg_ref, b_ref, o_ref, *,
                             tn, precision):
    """Single K step: no accumulators, write o_ref directly."""
    x = x_ref[...]
    rg = jnp.dot(x, wrg_ref[...], preferred_element_type=jnp.float32,
                 precision=precision)
    yb = jnp.dot(x * x, wb_ref[...], preferred_element_type=jnp.float32,
                 precision=precision)
    y1 = rg[:, :tn] + brg_ref[:, :tn].astype(jnp.float32)
    y2 = rg[:, tn:] + brg_ref[:, tn:].astype(jnp.float32)
    y3 = yb + b_ref[...].astype(jnp.float32)
    o_ref[...] = (y1 * y2 + y3).astype(o_ref.dtype)


def _quadratic_kernel_acc(x_ref, wrg_ref, wb_ref, brg_ref, b_ref, o_ref,
                          acc_rg_ref, acc_b_ref, *, tn, precision):
    """Multiple K steps (only used when num K steps >= 2)."""
    k = pl.program_id(2)
    last_k = pl.num_programs(2) - 1

    x = x_ref[...]
    rg = jnp.dot(x, wrg_ref[...], preferred_element_type=jnp.float32,
                 precision=precision)
    yb = jnp.dot(x * x, wb_ref[...], preferred_element_type=jnp.float32,
                 precision=precision)

    @pl.when(k == 0)
    def _first():
        # Write fresh (no zero-fill + RMW).
        acc_rg_ref[...] = rg
        acc_b_ref[...] = yb

    @pl.when(jnp.logical_and(k > 0, k < last_k))
    def _middle():
        acc_rg_ref[...] += rg
        acc_b_ref[...] += yb

    @pl.when(k == last_k)
    def _last():
        # Fold the final contribution + biases straight into o_ref.
        yrg = acc_rg_ref[...] + rg
        ybf = acc_b_ref[...] + yb
        y1 = yrg[:, :tn] + brg_ref[:, :tn].astype(jnp.float32)
        y2 = yrg[:, tn:] + brg_ref[:, tn:].astype(jnp.float32)
        y3 = ybf + b_ref[...].astype(jnp.float32)
        o_ref[...] = (y1 * y2 + y3).astype(o_ref.dtype)


# ----------------------------------------------------------------------------
# Weight packing (hoistable out of the per-call path)
# ----------------------------------------------------------------------------

class PackedQuadratic(NamedTuple):
    wrg: jax.Array   # (K_pad, 2*N_pad): per-tn-tile interleave [wr_j | wg_j]
    wb: jax.Array    # (K_pad, N_pad)
    brg: jax.Array   # (1, 2*N_pad)
    b: jax.Array     # (1, N_pad)
    n: int           # logical out_features
    k: int           # logical in_features
    tn: int
    tk: int


def pack_quadratic_params(wr, wg, wb, br, bg, b, *, dtype=None,
                          tn_max=512, tk_max=512, tm_hint=512,
                          allow_single_k=True):
    """Pads/transposes/interleaves weights once so repeated forward calls skip
    the prep (it reads/writes ~3*K*N elements, comparable to one weight pass)."""
    N, K = wr.shape
    if dtype is None:
        dtype = wr.dtype
    dtype = jnp.dtype(dtype)
    isz = dtype.itemsize
    budget, _ = _vmem_budget()

    tn_max = max(_LANE, tn_max)
    tk_max = max(_LANE, tk_max)

    tn = _choose_tile(N, tn_max, _LANE)
    N_pad = _round_up(N, tn)

    K_full = _round_up(K, _LANE)
    tm_est = max(8, tm_hint)
    if allow_single_k and _est_vmem_bytes(tm_est, tn, K_full, False, isz, isz) <= budget:
        tk = K_full            # single K step: x resident across the j sweep
    else:
        tk = _choose_tile(K, tk_max, _LANE)
        while tk > _LANE and _est_vmem_bytes(tm_est, tn, tk, True, isz, isz) > budget:
            tk = max(_LANE, _round_up(tk // 2, _LANE))
    K_pad = _round_up(K, tk)

    def pad_w(w):  # (out, in) -> (K_pad, N_pad)
        return jnp.pad(w.astype(dtype).T, ((0, K_pad - K), (0, N_pad - N)))

    def pad_b(v):
        return jnp.pad(v.astype(dtype), (0, N_pad - N))

    wr_p, wg_p, wb_p = pad_w(wr), pad_w(wg), pad_w(wb)
    br_p, bg_p, b_p = pad_b(br), pad_b(bg), pad_b(b)

    nb = N_pad // tn
    wrg = jnp.concatenate(
        [wr_p.reshape(K_pad, nb, tn), wg_p.reshape(K_pad, nb, tn)], axis=-1
    ).reshape(K_pad, 2 * N_pad)
    brg = jnp.concatenate(
        [br_p.reshape(nb, tn), bg_p.reshape(nb, tn)], axis=-1
    ).reshape(1, 2 * N_pad)

    return PackedQuadratic(wrg, wb_p, brg, b_p.reshape(1, N_pad),
                           int(N), int(K), int(tn), int(tk))


# ----------------------------------------------------------------------------
# Forward
# ----------------------------------------------------------------------------

def quadratic_forward_packed(x, params: PackedQuadratic, *, tm_max=512,
                             precision=None):
    N, K = params.n, params.k
    orig_shape = x.shape
    assert orig_shape[-1] == K, "last dim of x must equal in_features"

    dtype = params.wrg.dtype
    if x.dtype != dtype:
        # Unify dtypes so cost/numerics are predictable (review concern).
        x = x.astype(dtype)
    x2d = x.reshape(-1, K)
    M = x2d.shape[0]

    if precision is None:
        # f32: HIGHEST for parity with the PyTorch fp32 reference (3/6-pass MXU,
        # pass precision=lax.Precision.DEFAULT for the faster bf16_3x-style path).
        precision = (lax.Precision.HIGHEST
                     if dtype == jnp.dtype(jnp.float32) else lax.Precision.DEFAULT)

    tn, tk = params.tn, params.tk
    K_pad = params.wrg.shape[0]
    N_pad = params.wrg.shape[1] // 2
    nb = N_pad // tn
    nk = K_pad // tk

    align = _sublane_align(dtype)
    tm = _choose_tile(M, max(align, tm_max), align)
    M_pad = _round_up(M, tm)
    mb = M_pad // tm

    # v7x megacore: ensure >= 2 "parallel" programs so the 2nd TC isn't idle.
    if mb * nb == 1 and M >= 2 * align:
        tm = _round_up(-(-M // 2), align)
        M_pad = _round_up(M, tm)
        mb = M_pad // tm

    x_p = jnp.pad(x2d, ((0, M_pad - M), (0, K_pad - K)))

    itemsize = jnp.dtype(dtype).itemsize
    flops = 2.0 * M * K * (3 * N) + 4.0 * M * N
    bytes_accessed = (M * K + 3 * K * N + 3 * N + M * N) * itemsize
    cost = pl.CostEstimate(flops=int(flops), transcendentals=0,
                           bytes_accessed=int(bytes_accessed))

    _, vmem_limit = _vmem_budget()

    if nk == 1:
        kernel = functools.partial(_quadratic_kernel_single, tn=tn,
                                   precision=precision)
        out_p = pl.pallas_call(
            kernel,
            out_shape=jax.ShapeDtypeStruct((M_pad, N_pad), dtype),
            grid_spec=pltpu.PrefetchScalarGridSpec(
                num_scalar_prefetch=0,
                grid=(mb, nb),
                in_specs=[
                    pl.BlockSpec((tm, K_pad), lambda i, j: (i, 0)),     # x
                    pl.BlockSpec((K_pad, 2 * tn), lambda i, j: (0, j)),  # [wr|wg]
                    pl.BlockSpec((K_pad, tn), lambda i, j: (0, j)),      # wb
                    pl.BlockSpec((1, 2 * tn), lambda i, j: (0, j)),      # [br|bg]
                    pl.BlockSpec((1, tn), lambda i, j: (0, j)),          # b
                ],
                out_specs=pl.BlockSpec((tm, tn), lambda i, j: (i, j)),
            ),
            compiler_params=pltpu.CompilerParams(
                dimension_semantics=("parallel", "parallel"),
                vmem_limit_bytes=int(vmem_limit),
            ),
            cost_estimate=cost,
        )(x_p, params.wrg, params.wb, params.brg, params.b)
    else:
        kernel = functools.partial(_quadratic_kernel_acc, tn=tn,
                                   precision=precision)
        out_p = pl.pallas_call(
            kernel,
            out_shape=jax.ShapeDtypeStruct((M_pad, N_pad), dtype),
            grid_spec=pltpu.PrefetchScalarGridSpec(
                num_scalar_prefetch=0,
                grid=(mb, nb, nk),
                in_specs=[
                    pl.BlockSpec((tm, tk), lambda i, j, k: (i, k)),        # x
                    pl.BlockSpec((tk, 2 * tn), lambda i, j, k: (k, j)),    # [wr|wg]
                    pl.BlockSpec((tk, tn), lambda i, j, k: (k, j)),        # wb
                    pl.BlockSpec((1, 2 * tn), lambda i, j, k: (0, j)),     # [br|bg]
                    pl.BlockSpec((1, tn), lambda i, j, k: (0, j)),         # b
                ],
                out_specs=pl.BlockSpec((tm, tn), lambda i, j, k: (i, j)),
                scratch_shapes=[
                    pltpu.VMEM((tm, 2 * tn), jnp.float32),  # acc for y1|y2
                    pltpu.VMEM((tm, tn), jnp.float32),      # acc for y3
                ],
            ),
            compiler_params=pltpu.CompilerParams(
                dimension_semantics=("parallel", "parallel", "arbitrary"),
                vmem_limit_bytes=int(vmem_limit),
            ),
            cost_estimate=cost,
        )(x_p, params.wrg, params.wb, params.brg, params.b)

    out = out_p[:M, :N]
    return out.reshape(*orig_shape[:-1], N)


def quadratic_forward(x, wr, wg, wb, br, bg, b, *, tm_max=512, tn_max=512,
                      tk_max=512, precision=None, allow_single_k=True):
    """Convenience wrapper: packs weights (cast to x.dtype) then runs the kernel.
    For repeated calls with fixed weights, call pack_quadratic_params() once and
    reuse the result with quadratic_forward_packed()."""
    packed = pack_quadratic_params(wr, wg, wb, br, bg, b, dtype=x.dtype,
                                   tn_max=tn_max, tk_max=tk_max, tm_hint=tm_max,
                                   allow_single_k=allow_single_k)
    return quadratic_forward_packed(x, packed, tm_max=tm_max, precision=precision)


# ----------------------------------------------------------------------------
# Parameter init (matches PyTorch reset_parameters) and reference
# ----------------------------------------------------------------------------

def init_quadratic_params(key, in_features, out_features, dtype=jnp.float32):
    """kaiming_uniform_(a=sqrt(5)) on (out,in) weights and
    U(-1/sqrt(fan_in), 1/sqrt(fan_in)) biases == U(-1/sqrt(in), 1/sqrt(in))."""
    bound = 1.0 / math.sqrt(in_features)
    ks = jax.random.split(key, 6)
    shape_w = (out_features, in_features)
    wr = jax.random.uniform(ks[0], shape_w, dtype, -bound, bound)
    wg = jax.random.uniform(ks[1], shape_w, dtype, -bound, bound)
    wb = jax.random.uniform(ks[2], shape_w, dtype, -bound, bound)
    br = jax.random.uniform(ks[3], (out_features,), dtype, -bound, bound)
    bg = jax.random.uniform(ks[4], (out_features,), dtype, -bound, bound)
    b = jax.random.uniform(ks[5], (out_features,), dtype, -bound, bound)
    return wr, wg, wb, br, bg, b


def _reference(x, wr, wg, wb, br, bg, b):
    hp = lax.Precision.HIGHEST
    y1 = jnp.dot(x, wr.T, precision=hp) + br
    y2 = jnp.dot(x, wg.T, precision=hp) + bg
    y3 = jnp.dot(x * x, wb.T, precision=hp) + b
    return y1 * y2 + y3


if __name__ == "__main__":
    key = jax.random.PRNGKey(0)

    # Test 1: toy size (batch=16, in=32, out=32) — exercises single-K fast path
    # and the megacore grid split.
    k_x, k_p, key = jax.random.split(key, 3)
    x = jax.random.normal(k_x, (16, 32), dtype=jnp.float32)
    params = init_quadratic_params(k_p, 32, 32)
    out = jax.block_until_ready(quadratic_forward(x, *params))
    ref = _reference(x, *params)
    assert out.shape == ref.shape
    assert jnp.allclose(out, ref, atol=1e-5, rtol=1e-5), "mismatch (test 1)"

    # Test 2: 3-D input with extra leading dims (N, *, H_in) like nn.Linear.
    k_x, k_p, key = jax.random.split(key, 3)
    x = jax.random.normal(k_x, (2, 8, 32), dtype=jnp.float32)
    params = init_quadratic_params(k_p, 32, 32)
    out = jax.block_until_ready(quadratic_forward(x, *params))
    ref = _reference(x.reshape(-1, 32), *params).reshape(2, 8, 32)
    assert jnp.allclose(out, ref, atol=1e-5, rtol=1e-5), "mismatch (test 2)"

    # Test 3: non-aligned sizes, forced multi-K accumulation path (exercises the
    # padding logic and the first/middle/last accumulator kernel).
    k_x, k_p, key = jax.random.split(key, 3)
    x = jax.random.normal(k_x, (40, 640), dtype=jnp.float32)
    params = init_quadratic_params(k_p, 640, 200)
    out = jax.block_until_ready(
        quadratic_forward(x, *params, tk_max=256, allow_single_k=False))
    ref = _reference(x, *params)
    assert out.shape == (40, 200)
    assert jnp.allclose(out, ref, atol=1e-4, rtol=1e-5), "mismatch (test 3)"

    # Test 4: bf16 path (native MXU precision, 16-row sublane alignment,
    # pre-packed weights reused via quadratic_forward_packed).
    k_x, k_p, key = jax.random.split(key, 3)
    xb = jax.random.normal(k_x, (64, 256), dtype=jnp.float32).astype(jnp.bfloat16)
    params_b = tuple(p.astype(jnp.bfloat16)
                     for p in init_quadratic_params(k_p, 256, 128))
    packed = pack_quadratic_params(*params_b, dtype=jnp.bfloat16)
    out_b = jax.block_until_ready(quadratic_forward_packed(xb, packed))
    ref_b = _reference(xb.astype(jnp.float32),
                       *[p.astype(jnp.float32) for p in params_b])
    assert out_b.shape == (64, 128)
    assert jnp.allclose(out_b.astype(jnp.float32), ref_b,
                        atol=0.12, rtol=0.05), "mismatch (test 4)"

    print("KERNEL_OK")
</pallas_src>

<mosaic_0001>
module attributes {stable_mosaic.version = 11 : i64} {
  func.func @_quadratic_kernel_single(%arg0: i32, %arg1: i32, %arg2: memref<8x128xf32, #tpu.memory_space<vmem>>, %arg3: memref<128x256xf32, #tpu.memory_space<vmem>>, %arg4: memref<128x128xf32, #tpu.memory_space<vmem>>, %arg5: memref<1x256xf32, #tpu.memory_space<vmem>>, %arg6: memref<1x128xf32, #tpu.memory_space<vmem>>, %arg7: memref<8x128xf32, #tpu.memory_space<vmem>>) attributes {dimension_semantics = [#tpu.dimension_semantics<parallel>, #tpu.dimension_semantics<parallel>], iteration_bounds = array<i64: 2, 1>, scalar_prefetch = 0 : i64, scratch_operands = 0 : i64, tpu.core_type = #tpu.core_type<tc>, window_params = [{transform_indices = @transform_0, window_bounds = array<i64: 8, 128>}, {transform_indices = @transform_1, window_bounds = array<i64: 128, 256>}, {transform_indices = @transform_2, window_bounds = array<i64: 128, 128>}, {transform_indices = @transform_3, window_bounds = array<i64: 1, 256>}, {transform_indices = @transform_4, window_bounds = array<i64: 1, 128>}, {transform_indices = @transform_5, window_bounds = array<i64: 8, 128>}]} {
    %c0 = arith.constant 0 : index
    %c0_0 = arith.constant 0 : index
    %0 = vector.load %arg2[%c0, %c0_0] : memref<8x128xf32, #tpu.memory_space<vmem>>, vector<8x128xf32>
    %c0_1 = arith.constant 0 : index
    %c0_2 = arith.constant 0 : index
    %1 = vector.load %arg3[%c0_1, %c0_2] : memref<128x256xf32, #tpu.memory_space<vmem>>, vector<128x256xf32>
    %cst = arith.constant dense<0.000000e+00> : vector<8x256xf32>
    %2 = tpu.matmul %0, %1, %cst {dimension_numbers = #tpu.dot_dimension_numbers<[1], [0], [0], [1], [0, 0, 1, 1], [], []>, precision = #tpu.contract_precision<fp32>} : vector<8x128xf32>, vector<128x256xf32>, vector<8x256xf32> -> vector<8x256xf32>
    %3 = arith.mulf %0, %0 : vector<8x128xf32>
    %c0_3 = arith.constant 0 : index
    %c0_4 = arith.constant 0 : index
    %4 = vector.load %arg4[%c0_3, %c0_4] : memref<128x128xf32, #tpu.memory_space<vmem>>, vector<128x128xf32>
    %cst_5 = arith.constant dense<0.000000e+00> : vector<8x128xf32>
    %5 = tpu.matmul %3, %4, %cst_5 {dimension_numbers = #tpu.dot_dimension_numbers<[1], [0], [0], [1], [0, 0, 1, 1], [], []>, precision = #tpu.contract_precision<fp32>} : vector<8x128xf32>, vector<128x128xf32>, vector<8x128xf32> -> vector<8x128xf32>
    %6 = vector.extract_strided_slice %2 {offsets = [0, 0], sizes = [8, 128], strides = [1, 1]} : vector<8x256xf32> to vector<8x128xf32>
    %c0_6 = arith.constant 0 : index
    %c0_7 = arith.constant 0 : index
    %7 = vector.load %arg5[%c0_6, %c0_7] : memref<1x256xf32, #tpu.memory_space<vmem>>, vector<1x128xf32>
    %8 = vector.broadcast %7 : vector<1x128xf32> to vector<8x128xf32>
    %9 = arith.addf %6, %8 : vector<8x128xf32>
    %10 = vector.extract_strided_slice %2 {offsets = [0, 128], sizes = [8, 128], strides = [1, 1]} : vector<8x256xf32> to vector<8x128xf32>
    %c0_8 = arith.constant 0 : index
    %c128 = arith.constant 128 : index
    %11 = vector.load %arg5[%c0_8, %c128] : memref<1x256xf32, #tpu.memory_space<vmem>>, vector<1x128xf32>
    %12 = vector.broadcast %11 : vector<1x128xf32> to vector<8x128xf32>
    %13 = arith.addf %10, %12 : vector<8x128xf32>
    %c0_9 = arith.constant 0 : index
    %c0_10 = arith.constant 0 : index
    %14 = vector.load %arg6[%c0_9, %c0_10] : memref<1x128xf32, #tpu.memory_space<vmem>>, vector<1x128xf32>
    %15 = vector.broadcast %14 : vector<1x128xf32> to vector<8x128xf32>
    %16 = arith.addf %5, %15 : vector<8x128xf32>
    %17 = arith.mulf %9, %13 : vector<8x128xf32>
    %18 = arith.addf %17, %16 : vector<8x128xf32>
    %c0_11 = arith.constant 0 : index
    %c0_12 = arith.constant 0 : index
    %19 = vector.load %arg7[%c0_11, %c0_12] : memref<8x128xf32, #tpu.memory_space<vmem>>, vector<8x128xf32>
    tpu.vector_store %arg7[%c0_11, %c0_12], %18 {strides = array<i32>} : memref<8x128xf32, #tpu.memory_space<vmem>>, vector<8x128xf32>,
    return
  }
  func.func @transform_0(%arg0: i32, %arg1: i32) -> (i32, i32) {
    %c0_i32 = arith.constant 0 : i32
    %c0_i32_0 = arith.constant 0 : i32
    return %arg0, %c0_i32 : i32, i32
  }
  func.func @transform_1(%arg0: i32, %arg1: i32) -> (i32, i32) {
    %c0_i32 = arith.constant 0 : i32
    %c0_i32_0 = arith.constant 0 : i32
    return %c0_i32, %arg1 : i32, i32
  }
  func.func @transform_2(%arg0: i32, %arg1: i32) -> (i32, i32) {
    %c0_i32 = arith.constant 0 : i32
    %c0_i32_0 = arith.constant 0 : i32
    return %c0_i32, %arg1 : i32, i32
  }
  func.func @transform_3(%arg0: i32, %arg1: i32) -> (i32, i32) {
    %c0_i32 = arith.constant 0 : i32
    %c0_i32_0 = arith.constant 0 : i32
    return %c0_i32, %arg1 : i32, i32
  }
  func.func @transform_4(%arg0: i32, %arg1: i32) -> (i32, i32) {
    %c0_i32 = arith.constant 0 : i32
    %c0_i32_0 = arith.constant 0 : i32
    return %c0_i32, %arg1 : i32, i32
  }
  func.func @transform_5(%arg0: i32, %arg1: i32) -> (i32, i32) {
    %c0_i32 = arith.constant 0 : i32
    return %arg0, %arg1 : i32, i32
  }
}

</mosaic_0001>

<llo_original>
// kernel: tpu_custom_call.1
$region0: #{tpu_custom_call.1}
  #allocation0 [shape = 'u32[]', space=smem, size = 0x4, offset = 0x4, fixed_abs, tag = 'smem constant byte address 0x4 - core index']
  #allocation1 [shape = 'u32[144,128]{1,0:T(1,128)}', space=vmem, size = 0x12000, scoped, tag = 'internal scratch']
  %s0 = inlined_call_operand.hbm [shape: f32[16,128], index: 0, kind: input, shape index: {}]
  %s1 = inlined_call_operand.hbm [shape: f32[128,256], index: 1, kind: input, shape index: {}]
  %s2 = inlined_call_operand.hbm [shape: f32[128,128], index: 2, kind: input, shape index: {}]
  %s3 = inlined_call_operand.vmem [shape: f32[1,256], index: 3, kind: input, shape index: {}]
  %s4 = inlined_call_operand.vmem [shape: f32[1,128], index: 4, kind: input, shape index: {}]
  %s5 = inlined_call_operand.hbm [shape: f32[16,128], index: 5, kind: output, shape index: {}]
  %s6 = sld [smem:[#allocation0]]
  $region65: #{tpu_custom_call.1} parent=0
    _
  %s8 = ssub.s32 1, %s6
  %s9 = scalar_select 0, %s8, %s6
  $region1: #{tpu_custom_call.1} parent=0
    #allocation2 [shape = 'u8[8192]{0}', space=vmem, size = 0x2000, scoped, tag = 'input window, operand 0']
    #allocation3 [shape = 's32[2]{0}', space=sflag, size = 0x8, scoped, tag = 'scoped memory for tpu_custom_call.1']
    #allocation4 [shape = 's32[2]{0}', space=sflag, size = 0x8, scoped, tag = 'scoped memory for tpu_custom_call.1']
    #allocation5 [shape = 'u8[131072]{0}', space=vmem, size = 0x20000, scoped, tag = 'input window, operand 1, single buffered']
    #allocation6 [shape = 's32[1]{0}', space=sflag, size = 0x4, scoped, tag = 'scoped memory for tpu_custom_call.1']
    #allocation7 [shape = 'u8[65536]{0}', space=vmem, size = 0x10000, scoped, tag = 'input window, operand 2, single buffered']
    #allocation8 [shape = 'u8[8192]{0}', space=vmem, size = 0x2000, scoped, tag = 'output window, operand 0']
    %10 = vsyncpa [#allocation3], 0
    %s11 = scalar_lea.sflag [#allocation3], 1
    %12 = vsyncpa %s11, 0
    %13 = vsyncpa [#allocation6], 0
    %14 = vsyncpa [#allocation4], 0
    %s15 = scalar_lea.sflag [#allocation4], 1
    %16 = vsyncpa %s15, 0
    loop: start=0, step=1, limit=4
    $region2: #{tpu_custom_call.1} parent=1 // loop_pre_header
      _
    $region3: #{tpu_custom_call.1} parent=1 // loop_header
      %s18 = sphi 0, %s22
      %p19 = scmp.ge.s32.totalorder %s18, 4
      %s25 = sphi 0, %s37
      %s26 = sphi 0, %s33
      %s27 = sphi 0, %s25
      %s28 = sphi 0, %s26
      %s29 = sphi 0, %s27
      %s30 = sphi 0, %s28
      %s40 = sphi 0, %s42
      %s43 = sphi 0, %s40
      %s44 = sphi 0, %s43
      %s60 = sphi 0, %s44
      %s66 = sphi 0, %s68
      %s69 = sphi 0, %s66
      %s70 = sphi 0, %s69
      %s86 = sphi 0, %s70
      %s92 = sphi 0, %s94
      %s95 = sphi 0, %s92
      %s96 = sphi 0, %s95
      %s112 = sphi 0, %s96
      %s118 = sphi 0, %s120
      %s121 = sphi 0, %s118
      %s122 = sphi 0, %s121
      %s138 = sphi 0, %s122
      %s144 = sphi 0, %s146
      %s147 = sphi 0, %s144
      %s148 = sphi 0, %s147
      %s164 = sphi 0, %s148
      %s172 = sphi 0, %s174
      %s175 = sphi 0, %s172
      %s176 = sphi 0, %s175
      %s192 = sphi 0, %s176
    $region4: #{tpu_custom_call.1} parent=1 // loop_header_branch
      %21 = sbr.rel (%p19) target = $region8
    $region5: #{tpu_custom_call.1} parent=1 // loop_body
      %s23 = ssub.s32 %s18, 1
      %s24 = ssub.s32 %s18, 2
      %s31 = sadd.s32 1, %s26
      %p32 = scmp.ge.s32.totalorder %s31, 1
      %s33 = scalar_select %p32, 0, %s31
      %s34 = sadd.s32 1, %s25
      %s35 = scalar_select %p32, %s34, %s25
      %p36 = scmp.ge.s32.totalorder %s35, 2
      %s37 = scalar_select %p36, 0, %s35
      %s38 = ssub.s32 %s25, %s37
      %p39 = scmp.eq.s32.totalorder %s38, 0
      %s41 = sadd.s32 %s40, 1
      %s42 = scalar_select %p39, %s40, %s41
      %p45 = pneg %p39
      %p46 = scmp.eq.s32.totalorder %s18, 1
      %p47 = por %p45, %p46
      %p48 = scmp.ne.s32.totalorder %s40, %s43
      %p49 = scmp.eq.s32.totalorder %s18, 0
      %p50 = por %p48, %p49
      %p51 = scmp.ne.s32.totalorder %s40, %s43
      %p52 = scmp.eq.s32.totalorder %s23, 1
      %p53 = por %p51, %p52
      %p54 = scmp.ne.s32.totalorder %s43, %s44
      %p55 = scmp.eq.s32.totalorder %s23, 0
      %p56 = por %p54, %p55
      %p57 = scmp.ne.s32.totalorder %s43, %s44
      %p58 = scmp.eq.s32.totalorder %s24, 1
      %p59 = por %p57, %p58
      %p61 = scmp.ne.s32.totalorder %s44, %s60
      %p62 = scmp.eq.s32.totalorder %s24, 0
      %p63 = por %p61, %p62
      %s64 = ssub.s32 %s26, %s33
      %p65 = scmp.eq.s32.totalorder %s64, 0
      %s67 = sadd.s32 %s66, 1
      %s68 = scalar_select %p65, %s66, %s67
      %p71 = pneg %p65
      %p72 = scmp.eq.s32.totalorder %s18, 1
      %p73 = por %p71, %p72
      %p74 = scmp.ne.s32.totalorder %s66, %s69
      %p75 = scmp.eq.s32.totalorder %s18, 0
      %p76 = por %p74, %p75
      %p77 = scmp.ne.s32.totalorder %s66, %s69
      %p78 = scmp.eq.s32.totalorder %s23, 1
      %p79 = por %p77, %p78
      %p80 = scmp.ne.s32.totalorder %s69, %s70
      %p81 = scmp.eq.s32.totalorder %s23, 0
      %p82 = por %p80, %p81
      %p83 = scmp.ne.s32.totalorder %s69, %s70
      %p84 = scmp.eq.s32.totalorder %s24, 1
      %p85 = por %p83, %p84
      %p87 = scmp.ne.s32.totalorder %s70, %s86
      %p88 = scmp.eq.s32.totalorder %s24, 0
      %p89 = por %p87, %p88
      %s90 = ssub.s32 %s26, %s33
      %p91 = scmp.eq.s32.totalorder %s90, 0
      %s93 = sadd.s32 %s92, 1
      %s94 = scalar_select %p91, %s92, %s93
      %p97 = pneg %p91
      %p98 = scmp.eq.s32.totalorder %s18, 1
      %p99 = por %p97, %p98
      %p100 = scmp.ne.s32.totalorder %s92, %s95
      %p101 = scmp.eq.s32.totalorder %s18, 0
      %p102 = por %p100, %p101
      %p103 = scmp.ne.s32.totalorder %s92, %s95
      %p104 = scmp.eq.s32.totalorder %s23, 1
      %p105 = por %p103, %p104
      %p106 = scmp.ne.s32.totalorder %s95, %s96
      %p107 = scmp.eq.s32.totalorder %s23, 0
      %p108 = por %p106, %p107
      %p109 = scmp.ne.s32.totalorder %s95, %s96
      %p110 = scmp.eq.s32.totalorder %s24, 1
      %p111 = por %p109, %p110
      %p113 = scmp.ne.s32.totalorder %s96, %s112
      %p114 = scmp.eq.s32.totalorder %s24, 0
      %p115 = por %p113, %p114
      %s116 = ssub.s32 %s26, %s33
      %p117 = scmp.eq.s32.totalorder %s116, 0
      %s119 = sadd.s32 %s118, 1
      %s120 = scalar_select %p117, %s118, %s119
      %p123 = pneg %p117
      %p124 = scmp.eq.s32.totalorder %s18, 1
      %p125 = por %p123, %p124
      %p126 = scmp.ne.s32.totalorder %s118, %s121
      %p127 = scmp.eq.s32.totalorder %s18, 0
      %p128 = por %p126, %p127
      %p129 = scmp.ne.s32.totalorder %s118, %s121
      %p130 = scmp.eq.s32.totalorder %s23, 1
      %p131 = por %p129, %p130
      %p132 = scmp.ne.s32.totalorder %s121, %s122
      %p133 = scmp.eq.s32.totalorder %s23, 0
      %p134 = por %p132, %p133
      %p135 = scmp.ne.s32.totalorder %s121, %s122
      %p136 = scmp.eq.s32.totalorder %s24, 1
      %p137 = por %p135, %p136
      %p139 = scmp.ne.s32.totalorder %s122, %s138
      %p140 = scmp.eq.s32.totalorder %s24, 0
      %p141 = por %p139, %p140
      %s142 = ssub.s32 %s26, %s33
      %p143 = scmp.eq.s32.totalorder %s142, 0
      %s145 = sadd.s32 %s144, 1
      %s146 = scalar_select %p143, %s144, %s145
      %p149 = pneg %p143
      %p150 = scmp.eq.s32.totalorder %s18, 1
      %p151 = por %p149, %p150
      %p152 = scmp.ne.s32.totalorder %s144, %s147
      %p153 = scmp.eq.s32.totalorder %s18, 0
      %p154 = por %p152, %p153
      %p155 = scmp.ne.s32.totalorder %s144, %s147
      %p156 = scmp.eq.s32.totalorder %s23, 1
      %p157 = por %p155, %p156
      %p158 = scmp.ne.s32.totalorder %s147, %s148
      %p159 = scmp.eq.s32.totalorder %s23, 0
      %p160 = por %p158, %p159
      %p161 = scmp.ne.s32.totalorder %s147, %s148
      %p162 = scmp.eq.s32.totalorder %s24, 1
      %p163 = por %p161, %p162
      %p165 = scmp.ne.s32.totalorder %s148, %s164
      %p166 = scmp.eq.s32.totalorder %s24, 0
      %p167 = por %p165, %p166
      %s168 = ssub.s32 %s25, %s37
      %s169 = ssub.s32 %s26, %s33
      %s170 = sor.u32 %s168, %s169
      %p171 = scmp.eq.s32.totalorder %s170, 0
      %s173 = sadd.s32 %s172, 1
      %s174 = scalar_select %p171, %s172, %s173
      %p177 = pneg %p171
      %p178 = scmp.eq.s32.totalorder %s18, 1
      %p179 = por %p177, %p178
      %p180 = scmp.ne.s32.totalorder %s172, %s175
      %p181 = scmp.eq.s32.totalorder %s18, 0
      %p182 = por %p180, %p181
      %p183 = scmp.ne.s32.totalorder %s172, %s175
      %p184 = scmp.eq.s32.totalorder %s23, 1
      %p185 = por %p183, %p184
      %p186 = scmp.ne.s32.totalorder %s175, %s176
      %p187 = scmp.eq.s32.totalorder %s23, 0
      %p188 = por %p186, %p187
      %p189 = scmp.ne.s32.totalorder %s175, %s176
      %p190 = scmp.eq.s32.totalorder %s24, 1
      %p191 = por %p189, %p190
      %p193 = scmp.ne.s32.totalorder %s176, %s192
      %p194 = scmp.eq.s32.totalorder %s24, 0
      %p195 = por %p193, %p194
      %p196 = scmp.le.s32.totalorder 1, %s18
      %p197 = scmp.lt.s32.totalorder %s18, 3
      %p198 = pnand %p196, %p197
      %p199 = pneg %p198
      // Predicated region
      $region9: #{tpu_custom_call.1} parent=5 // pred_check
        _
      $region10: #{tpu_custom_call.1} parent=5 // pred_check_branch
        %201 = sbr.rel (%p198) target = $region12
      $region11: #{tpu_custom_call.1} parent=5 // pred_region
        %s202 = ssub.s32 %s18, 1
        // Predicated region
        $region13: #{tpu_custom_call.1} parent=11 // pred_check
          %p203 = pneg %p82
        $region14: #{tpu_custom_call.1} parent=11 // pred_check_branch
          %205 = sbr.rel (%p203) target = $region16
        $region15: #{tpu_custom_call.1} parent=11 // pred_region
          %s206 = smul.u32 2, %s28
          %s208 = ssub.s32 4096, 4096
          %209 = vsyncadd [#allocation6], %s208
          %s210 = smul.addr %s206, 128
          %s211 = scalar_lea.hbm %s1, %s210
          %s212 = sshll.u32 [#allocation5], 4
          %s213 = int_to_ptr.vmem [resolvable:$true] %s212
          %218 = dma.hbm_to_vmem [thread:$0]  %s211, 4096, %s213, [#allocation6], 256, 256, 16
        $region16: #{tpu_custom_call.1} parent=11 // pred_fallthru
          _
        // Predicated region
        $region17: #{tpu_custom_call.1} parent=11 // pred_check
          %p219 = pneg %p108
        $region18: #{tpu_custom_call.1} parent=11 // pred_check_branch
          %221 = sbr.rel (%p219) target = $region20
        $region19: #{tpu_custom_call.1} parent=11 // pred_region
          %s223 = ssub.s32 2048, 2048
          %224 = vsyncadd [#allocation6], %s223
          %s225 = smul.addr %s28, 128
          %s226 = scalar_lea.hbm %s2, %s225
          %s227 = sshll.u32 [#allocation7], 4
          %s228 = int_to_ptr.vmem [resolvable:$true] %s227
          %233 = dma.hbm_to_vmem [thread:$0]  %s226, 2048, %s228, [#allocation6], 128, 128, 8
        $region20: #{tpu_custom_call.1} parent=11 // pred_fallthru
          _
        // Predicated region
        $region21: #{tpu_custom_call.1} parent=11 // pred_check
          %p234 = pneg %p134
        $region22: #{tpu_custom_call.1} parent=11 // pred_check_branch
          %236 = sbr.rel (%p234) target = $region24
        $region23: #{tpu_custom_call.1} parent=11 // pred_region
          %s237 = smul.u32 2, %s28
          %p238 = scmp.lt.s32.totalorder %s237, 1
          %s239 = scalar_select %p238, %s237, 1
          %s240 = scalar_lea.vmem %s3, %s239
          %s241 = smul.u32 2, %s28
        $region24: #{tpu_custom_call.1} parent=11 // pred_fallthru
          _
        // Predicated region
        $region25: #{tpu_custom_call.1} parent=11 // pred_check
          %p242 = pneg %p160
        $region26: #{tpu_custom_call.1} parent=11 // pred_check_branch
          %244 = sbr.rel (%p242) target = $region28
        $region27: #{tpu_custom_call.1} parent=11 // pred_region
          %p245 = scmp.lt.s32.totalorder %s28, 0
          %s246 = scalar_select %p245, %s28, 0
          %s247 = scalar_lea.vmem %s4, %s246
        $region28: #{tpu_custom_call.1} parent=11 // pred_fallthru
          _
      $region12: #{tpu_custom_call.1} parent=5 // pred_fallthru
        _
      %p248 = scmp.lt.s32.totalorder %s18, 2
      // Predicated region
      $region29: #{tpu_custom_call.1} parent=5 // pred_check
        %p249 = pneg %p248
      $region30: #{tpu_custom_call.1} parent=5 // pred_check_branch
        %251 = sbr.rel (%p249) target = $region32
      $region31: #{tpu_custom_call.1} parent=5 // pred_region
        // Predicated region
        $region33: #{tpu_custom_call.1} parent=31 // pred_check
          %p252 = pneg %p50
        $region34: #{tpu_custom_call.1} parent=31 // pred_check_branch
          %254 = sbr.rel (%p252) target = $region36
        $region35: #{tpu_custom_call.1} parent=31 // pred_region
          %s255 = sand.u32 %s40, 1
          %s256 = scalar_lea.sflag [#allocation3], %s255
          %s257 = sand.u32 %s40, 1
          %s258 = smul.addr %s257, 8
          %s259 = scalar_lea.vmem [#allocation2], %s258
          %s261 = ssub.s32 128, 128
          %262 = vsyncadd %s256, %s261
          %s263 = smul.addr %s25, 128
          %s264 = scalar_lea.hbm %s0, %s263
          %s266 = sshll.u32 %s259, 4
          %s267 = int_to_ptr.vmem [resolvable:$true] %s266
          %269 = dma.hbm_to_vmem [thread:$0]  %s264, 128, %s267, %s256
        $region36: #{tpu_custom_call.1} parent=31 // pred_fallthru
          _
      $region32: #{tpu_custom_call.1} parent=5 // pred_fallthru
        _
      %p270 = scmp.le.s32.totalorder 1, %s18
      %p271 = scmp.lt.s32.totalorder %s18, 3
      %p272 = pnand %p270, %p271
      %p273 = pneg %p272
      // Predicated region
      $region37: #{tpu_custom_call.1} parent=5 // pred_check
        _
      $region38: #{tpu_custom_call.1} parent=5 // pred_check_branch
        %275 = sbr.rel (%p272) target = $region40
      $region39: #{tpu_custom_call.1} parent=5 // pred_region
        %s276 = ssub.s32 %s18, 1
        %s277 = sand.u32 %s43, 1
        %s278 = scalar_lea.sflag [#allocation3], %s277
        %s279 = sand.u32 %s43, 1
        %s280 = smul.addr %s279, 8
        %s281 = scalar_lea.vmem [#allocation2], %s280
        // Predicated region
        $region41: #{tpu_custom_call.1} parent=39 // pred_check
          %p282 = pneg %p56
        $region42: #{tpu_custom_call.1} parent=39 // pred_check_branch
          %284 = sbr.rel (%p282) target = $region44
        $region43: #{tpu_custom_call.1} parent=39 // pred_region
          %285 = dma.done %s278, 128
        $region44: #{tpu_custom_call.1} parent=39 // pred_fallthru
          _
        // Predicated region
        $region45: #{tpu_custom_call.1} parent=39 // pred_check
          %p286 = pneg %p82
        $region46: #{tpu_custom_call.1} parent=39 // pred_check_branch
          %288 = sbr.rel (%p286) target = $region48
        $region47: #{tpu_custom_call.1} parent=39 // pred_region
          %289 = dma.done [#allocation6], 4096
        $region48: #{tpu_custom_call.1} parent=39 // pred_fallthru
          _
        // Predicated region
        $region49: #{tpu_custom_call.1} parent=39 // pred_check
          %p290 = pneg %p108
        $region50: #{tpu_custom_call.1} parent=39 // pred_check_branch
          %292 = sbr.rel (%p290) target = $region52
        $region51: #{tpu_custom_call.1} parent=39 // pred_region
          %293 = dma.done [#allocation6], 2048
        $region52: #{tpu_custom_call.1} parent=39 // pred_fallthru
          _
        %s294 = sand.u32 %s43, 1
        %s295 = scalar_lea.sflag [#allocation3], %s294
        %s296 = sand.u32 %s43, 1
        %s297 = smul.addr %s296, 8
        %s298 = scalar_lea.vmem [#allocation2], %s297
        %p299 = pneg %p56
        %p300 = pneg %p53
        %p301 = pneg %p82
        %p302 = pneg %p79
        %p303 = pneg %p108
        %p304 = pneg %p105
        %s305 = smul.u32 2, %s28
        %p306 = scmp.lt.s32.totalorder %s305, 1
        %s307 = scalar_select %p306, %s305, 1
        %s308 = scalar_lea.vmem %s3, %s307
        %p309 = pneg %p134
        %p310 = pneg %p131
        %p311 = scmp.lt.s32.totalorder %s28, 0
        %s312 = scalar_select %p311, %s28, 0
        %s313 = scalar_lea.vmem %s4, %s312
        %p314 = pneg %p160
        %p315 = pneg %p157
        %p316 = pneg %p188
        %p317 = pneg %p185
        %s318 = sand.u32 %s175, 1
        %s319 = scalar_lea.sflag [#allocation4], %s318
        %s320 = sand.u32 %s175, 1
        %s321 = smul.addr %s320, 8
        %s322 = scalar_lea.vmem [#allocation8], %s321
        %s323 = smul.u32 2, %s28
        %s324 = smul.u32 2, %s28
        %p325 = scmp.lt.s32.totalorder %s324, 1
        %s326 = scalar_select %p325, %s324, 1
        %s327 = scalar_lea.vmem %s3, %s326
        %s328 = smul.u32 2, %s28
        %p329 = scmp.lt.s32.totalorder %s28, 0
        %s330 = scalar_select %p329, %s28, 0
        %s331 = scalar_lea.vmem %s4, %s330
        %v332 = vld [vmem:[%s281] sm:$0xff]
        %v333 = vld [vmem:[#allocation5] sm:$0xff]
        %v334 = vld [vmem:[#allocation5 + $0x8] sm:$0xff]
        %v335 = vld [vmem:[#allocation5 + $0x10] sm:$0xff]
        %v336 = vld [vmem:[#allocation5 + $0x18] sm:$0xff]
        %v337 = vld [vmem:[#allocation5 + $0x20] sm:$0xff]
        %v338 = vld [vmem:[#allocation5 + $0x28] sm:$0xff]
        %v339 = vld [vmem:[#allocation5 + $0x30] sm:$0xff]
        %v340 = vld [vmem:[#allocation5 + $0x38] sm:$0xff]
        %v341 = vld [vmem:[#allocation5 + $0x40] sm:$0xff]
        %v342 = vld [vmem:[#allocation5 + $0x48] sm:$0xff]
        %v343 = vld [vmem:[#allocation5 + $0x50] sm:$0xff]
        %v344 = vld [vmem:[#allocation5 + $0x58] sm:$0xff]
        %v345 = vld [vmem:[#allocation5 + $0x60] sm:$0xff]
        %v346 = vld [vmem:[#allocation5 + $0x68] sm:$0xff]
        %v347 = vld [vmem:[#allocation5 + $0x70] sm:$0xff]
        %v348 = vld [vmem:[#allocation5 + $0x78] sm:$0xff]
        %v349 = vld [vmem:[#allocation5 + $0x80] sm:$0xff]
        %v350 = vld [vmem:[#allocation5 + $0x88] sm:$0xff]
        %v351 = vld [vmem:[#allocation5 + $0x90] sm:$0xff]
        %v352 = vld [vmem:[#allocation5 + $0x98] sm:$0xff]
        %v353 = vld [vmem:[#allocation5 + $0xa0] sm:$0xff]
        %v354 = vld [vmem:[#allocation5 + $0xa8] sm:$0xff]
        %v355 = vld [vmem:[#allocation5 + $0xb0] sm:$0xff]
        %v356 = vld [vmem:[#allocation5 + $0xb8] sm:$0xff]
        %v357 = vld [vmem:[#allocation5 + $0xc0] sm:$0xff]
        %v358 = vld [vmem:[#allocation5 + $0xc8] sm:$0xff]
        %v359 = vld [vmem:[#allocation5 + $0xd0] sm:$0xff]
        %v360 = vld [vmem:[#allocation5 + $0xd8] sm:$0xff]
        %v361 = vld [vmem:[#allocation5 + $0xe0] sm:$0xff]
        %v362 = vld [vmem:[#allocation5 + $0xe8] sm:$0xff]
        %v363 = vld [vmem:[#allocation5 + $0xf0] sm:$0xff]
        %v364 = vld [vmem:[#allocation5 + $0xf8] sm:$0xff]
        %v365 = vand.u32 %v334, 4294901760
        %366 = vmatprep.subr.mxu0 %v365
        %v367 = vand.u32 %v333, 4294901760
        %368 = vmatpush1.msra.mxu0 %v367
        %v369 = vand.u32 %v336, 4294901760
        %370 = vmatprep.subr.mxu0 %v369
        %v371 = vand.u32 %v335, 4294901760
        %372 = vmatpush1.msra.mxu0 %v371
        %v373 = vand.u32 %v338, 4294901760
        %374 = vmatprep.subr.mxu0 %v373
        %v375 = vand.u32 %v337, 4294901760
        %376 = vmatpush1.msra.mxu0 %v375
        %v377 = vand.u32 %v340, 4294901760
        %378 = vmatprep.subr.mxu0 %v377
        %v379 = vand.u32 %v339, 4294901760
        %380 = vmatpush1.msra.mxu0 %v379
        %v381 = vand.u32 %v342, 4294901760
        %382 = vmatprep.subr.mxu0 %v381
        %v383 = vand.u32 %v341, 4294901760
        %384 = vmatpush1.msra.mxu0 %v383
        %v385 = vand.u32 %v344, 4294901760
        %386 = vmatprep.subr.mxu0 %v385
        %v387 = vand.u32 %v343, 4294901760
        %388 = vmatpush1.msra.mxu0 %v387
        %v389 = vand.u32 %v346, 4294901760
        %390 = vmatprep.subr.mxu0 %v389
        %v391 = vand.u32 %v345, 4294901760
        %392 = vmatpush1.msra.mxu0 %v391
        %v393 = vand.u32 %v348, 4294901760
        %394 = vmatprep.subr.mxu0 %v393
        %v395 = vand.u32 %v347, 4294901760
        %396 = vmatpush1.msra.mxu0 %v395
        %v397 = vand.u32 %v350, 4294901760
        %398 = vmatprep.subr.mxu0 %v397
        %v399 = vand.u32 %v349, 4294901760
        %400 = vmatpush1.msra.mxu0 %v399
        %v401 = vand.u32 %v352, 4294901760
        %402 = vmatprep.subr.mxu0 %v401
        %v403 = vand.u32 %v351, 4294901760
        %404 = vmatpush1.msra.mxu0 %v403
        %v405 = vand.u32 %v354, 4294901760
        %406 = vmatprep.subr.mxu0 %v405
        %v407 = vand.u32 %v353, 4294901760
        %408 = vmatpush1.msra.mxu0 %v407
        %v409 = vand.u32 %v356, 4294901760
        %410 = vmatprep.subr.mxu0 %v409
        %v411 = vand.u32 %v355, 4294901760
        %412 = vmatpush1.msra.mxu0 %v411
        %v413 = vand.u32 %v358, 4294901760
        %414 = vmatprep.subr.mxu0 %v413
        %v415 = vand.u32 %v357, 4294901760
        %416 = vmatpush1.msra.mxu0 %v415
        %v417 = vand.u32 %v360, 4294901760
        %418 = vmatprep.subr.mxu0 %v417
        %v419 = vand.u32 %v359, 4294901760
        %420 = vmatpush1.msra.mxu0 %v419
        %v421 = vand.u32 %v362, 4294901760
        %422 = vmatprep.subr.mxu0 %v421
        %v423 = vand.u32 %v361, 4294901760
        %424 = vmatpush1.msra.mxu0 %v423
        %v425 = vand.u32 %v364, 4294901760
        %426 = vmatprep.subr.mxu0 %v425
        %v427 = vand.u32 %v363, 4294901760
        %428 = vmatpush1.msra.mxu0 %v427
        %429 = vmatprep.subr.mxu0 0.0
        %430 = vmatpush1.msra.mxu0 0.0
        %431 = vmatprep.subr.mxu0 0.0
        %432 = vmatpush1.msra.mxu0 0.0
        %433 = vmatprep.subr.mxu0 0.0
        %434 = vmatpush1.msra.mxu0 0.0
        %435 = vmatprep.subr.mxu0 0.0
        %436 = vmatpush1.msra.mxu0 0.0
        %437 = vmatprep.subr.mxu0 0.0
        %438 = vmatpush1.msra.mxu0 0.0
        %439 = vmatprep.subr.mxu0 0.0
        %440 = vmatpush1.msra.mxu0 0.0
        %441 = vmatprep.subr.mxu0 0.0
        %442 = vmatpush1.msra.mxu0 0.0
        %443 = vmatprep.subr.mxu0 0.0
        %444 = vmatpush1.msra.mxu0 0.0
        %445 = vmatprep.subr.mxu0 0.0
        %446 = vmatpush1.msra.mxu0 0.0
        %447 = vmatprep.subr.mxu0 0.0
        %448 = vmatpush1.msra.mxu0 0.0
        %449 = vmatprep.subr.mxu0 0.0
        %450 = vmatpush1.msra.mxu0 0.0
        %451 = vmatprep.subr.mxu0 0.0
        %452 = vmatpush1.msra.mxu0 0.0
        %453 = vmatprep.subr.mxu0 0.0
        %454 = vmatpush1.msra.mxu0 0.0
        %455 = vmatprep.subr.mxu0 0.0
        %456 = vmatpush1.msra.mxu0 0.0
        %457 = vmatprep.subr.mxu0 0.0
        %458 = vmatpush1.msra.mxu0 0.0
        %459 = vmatprep.subr.mxu0 0.0
        %460 = vmatpush1.msra.mxu0 0.0
        %461 = vmatprep.mubr.f32.mxu0 0.0
        %v462 = vand.u32 %v332, 4294901760
        %v463 = vsub.f32 %v332, %v462
        %v464 = vand.u32 %v463, 4294901760
        %v465 = vsub.f32 %v463, %v464
        %v466 = vand.u32 %v465, 4294901760
        %467 = vmatmul.mubr.f32.gmra.mrb[0].mxu0 %v466
        %v468 = vpop.f32.mrb[0].mxu0
        %v469 = vadd.f32 0.0, %v468
        %v470 = vpop.f32.mrb[0].mxu0
        %v471 = vadd.f32 0.0, %v470
        %472 = vdwg.mxu0
        %v473 = vand.u32 %v334, 4294901760
        %v474 = vsub.f32 %v334, %v473
        %v475 = vand.u32 %v474, 4294901760
        %v476 = vsub.f32 %v474, %v475
        %v477 = vand.u32 %v476, 4294901760
        %478 = vmatprep.subr.mxu0 %v477
        %v479 = vand.u32 %v333, 4294901760
        %v480 = vsub.f32 %v333, %v479
        %v481 = vand.u32 %v480, 4294901760
        %v482 = vsub.f32 %v480, %v481
        %v483 = vand.u32 %v482, 4294901760
        %484 = vmatpush1.msra.mxu0 %v483
        %v485 = vand.u32 %v336, 4294901760
        %v486 = vsub.f32 %v336, %v485
        %v487 = vand.u32 %v486, 4294901760
        %v488 = vsub.f32 %v486, %v487
        %v489 = vand.u32 %v488, 4294901760
        %490 = vmatprep.subr.mxu0 %v489
        %v491 = vand.u32 %v335, 4294901760
        %v492 = vsub.f32 %v335, %v491
        %v493 = vand.u32 %v492, 4294901760
        %v494 = vsub.f32 %v492, %v493
        %v495 = vand.u32 %v494, 4294901760
        %496 = vmatpush1.msra.mxu0 %v495
        %v497 = vand.u32 %v338, 4294901760
        %v498 = vsub.f32 %v338, %v497
        %v499 = vand.u32 %v498, 4294901760
        %v500 = vsub.f32 %v498, %v499
        %v501 = vand.u32 %v500, 4294901760
        %502 = vmatprep.subr.mxu0 %v501
        %v503 = vand.u32 %v337, 4294901760
        %v504 = vsub.f32 %v337, %v503
        %v505 = vand.u32 %v504, 4294901760
        %v506 = vsub.f32 %v504, %v505
        %v507 = vand.u32 %v506, 4294901760
        %508 = vmatpush1.msra.mxu0 %v507
        %v509 = vand.u32 %v340, 4294901760
        %v510 = vsub.f32 %v340, %v509
        %v511 = vand.u32 %v510, 4294901760
        %v512 = vsub.f32 %v510, %v511
        %v513 = vand.u32 %v512, 4294901760
        %514 = vmatprep.subr.mxu0 %v513
        %v515 = vand.u32 %v339, 4294901760
        %v516 = vsub.f32 %v339, %v515
        %v517 = vand.u32 %v516, 4294901760
        %v518 = vsub.f32 %v516, %v517
        %v519 = vand.u32 %v518, 4294901760
        %520 = vmatpush1.msra.mxu0 %v519
        %v521 = vand.u32 %v342, 4294901760
        %v522 = vsub.f32 %v342, %v521
        %v523 = vand.u32 %v522, 4294901760
        %v524 = vsub.f32 %v522, %v523
        %v525 = vand.u32 %v524, 4294901760
        %526 = vmatprep.subr.mxu0 %v525
        %v527 = vand.u32 %v341, 4294901760
        %v528 = vsub.f32 %v341, %v527
        %v529 = vand.u32 %v528, 4294901760
        %v530 = vsub.f32 %v528, %v529
        %v531 = vand.u32 %v530, 4294901760
        %532 = vmatpush1.msra.mxu0 %v531
        %v533 = vand.u32 %v344, 4294901760
        %v534 = vsub.f32 %v344, %v533
        %v535 = vand.u32 %v534, 4294901760
        %v536 = vsub.f32 %v534, %v535
        %v537 = vand.u32 %v536, 4294901760
        %538 = vmatprep.subr.mxu0 %v537
        %v539 = vand.u32 %v343, 4294901760
        %v540 = vsub.f32 %v343, %v539
        %v541 = vand.u32 %v540, 4294901760
        %v542 = vsub.f32 %v540, %v541
        %v543 = vand.u32 %v542, 4294901760
        %544 = vmatpush1.msra.mxu0 %v543
        %v545 = vand.u32 %v346, 4294901760
        %v546 = vsub.f32 %v346, %v545
        %v547 = vand.u32 %v546, 4294901760
        %v548 = vsub.f32 %v546, %v547
        %v549 = vand.u32 %v548, 4294901760
        %550 = vmatprep.subr.mxu0 %v549
        %v551 = vand.u32 %v345, 4294901760
        %v552 = vsub.f32 %v345, %v551
        %v553 = vand.u32 %v552, 4294901760
        %v554 = vsub.f32 %v552, %v553
        %v555 = vand.u32 %v554, 4294901760
        %556 = vmatpush1.msra.mxu0 %v555
        %v557 = vand.u32 %v348, 4294901760
        %v558 = vsub.f32 %v348, %v557
        %v559 = vand.u32 %v558, 4294901760
        %v560 = vsub.f32 %v558, %v559
        %v561 = vand.u32 %v560, 4294901760
        %562 = vmatprep.subr.mxu0 %v561
        %v563 = vand.u32 %v347, 4294901760
        %v564 = vsub.f32 %v347, %v563
        %v565 = vand.u32 %v564, 4294901760
        %v566 = vsub.f32 %v564, %v565
        %v567 = vand.u32 %v566, 4294901760
        %568 = vmatpush1.msra.mxu0 %v567
        %v569 = vand.u32 %v350, 4294901760
        %v570 = vsub.f32 %v350, %v569
        %v571 = vand.u32 %v570, 4294901760
        %v572 = vsub.f32 %v570, %v571
        %v573 = vand.u32 %v572, 4294901760
        %574 = vmatprep.subr.mxu0 %v573
        %v575 = vand.u32 %v349, 4294901760
        %v576 = vsub.f32 %v349, %v575
        %v577 = vand.u32 %v576, 4294901760
        %v578 = vsub.f32 %v576, %v577
        %v579 = vand.u32 %v578, 4294901760
        %580 = vmatpush1.msra.mxu0 %v579
        %v581 = vand.u32 %v352, 4294901760
        %v582 = vsub.f32 %v352, %v581
        %v583 = vand.u32 %v582, 4294901760
        %v584 = vsub.f32 %v582, %v583
        %v585 = vand.u32 %v584, 4294901760
        %586 = vmatprep.subr.mxu0 %v585
        %v587 = vand.u32 %v351, 4294901760
        %v588 = vsub.f32 %v351, %v587
        %v589 = vand.u32 %v588, 4294901760
        %v590 = vsub.f32 %v588, %v589
        %v591 = vand.u32 %v590, 4294901760
        %592 = vmatpush1.msra.mxu0 %v591
        %v593 = vand.u32 %v354, 4294901760
        %v594 = vsub.f32 %v354, %v593
        %v595 = vand.u32 %v594, 4294901760
        %v596 = vsub.f32 %v594, %v595
        %v597 = vand.u32 %v596, 4294901760
        %598 = vmatprep.subr.mxu0 %v597
        %v599 = vand.u32 %v353, 4294901760
        %v600 = vsub.f32 %v353, %v599
        %v601 = vand.u32 %v600, 4294901760
        %v602 = vsub.f32 %v600, %v601
        %v603 = vand.u32 %v602, 4294901760
        %604 = vmatpush1.msra.mxu0 %v603
        %v605 = vand.u32 %v356, 4294901760
        %v606 = vsub.f32 %v356, %v605
        %v607 = vand.u32 %v606, 4294901760
        %v608 = vsub.f32 %v606, %v607
        %v609 = vand.u32 %v608, 4294901760
        %610 = vmatprep.subr.mxu0 %v609
        %v611 = vand.u32 %v355, 4294901760
        %v612 = vsub.f32 %v355, %v611
        %v613 = vand.u32 %v612, 4294901760
        %v614 = vsub.f32 %v612, %v613
        %v615 = vand.u32 %v614, 4294901760
        %616 = vmatpush1.msra.mxu0 %v615
        %v617 = vand.u32 %v358, 4294901760
        %v618 = vsub.f32 %v358, %v617
        %v619 = vand.u32 %v618, 4294901760
        %v620 = vsub.f32 %v618, %v619
        %v621 = vand.u32 %v620, 4294901760
        %622 = vmatprep.subr.mxu0 %v621
        %v623 = vand.u32 %v357, 4294901760
        %v624 = vsub.f32 %v357, %v623
        %v625 = vand.u32 %v624, 4294901760
        %v626 = vsub.f32 %v624, %v625
        %v627 = vand.u32 %v626, 4294901760
        %628 = vmatpush1.msra.mxu0 %v627
        %v629 = vand.u32 %v360, 4294901760
        %v630 = vsub.f32 %v360, %v629
        %v631 = vand.u32 %v630, 4294901760
        %v632 = vsub.f32 %v630, %v631
        %v633 = vand.u32 %v632, 4294901760
        %634 = vmatprep.subr.mxu0 %v633
        %v635 = vand.u32 %v359, 4294901760
        %v636 = vsub.f32 %v359, %v635
        %v637 = vand.u32 %v636, 4294901760
        %v638 = vsub.f32 %v636, %v637
        %v639 = vand.u32 %v638, 4294901760
        %640 = vmatpush1.msra.mxu0 %v639
        %v641 = vand.u32 %v362, 4294901760
        %v642 = vsub.f32 %v362, %v641
        %v643 = vand.u32 %v642, 4294901760
        %v644 = vsub.f32 %v642, %v643
        %v645 = vand.u32 %v644, 4294901760
        %646 = vmatprep.subr.mxu0 %v645
        %v647 = vand.u32 %v361, 4294901760
        %v648 = vsub.f32 %v361, %v647
        %v649 = vand.u32 %v648, 4294901760
        %v650 = vsub.f32 %v648, %v649
        %v651 = vand.u32 %v650, 4294901760
        %652 = vmatpush1.msra.mxu0 %v651
        %v653 = vand.u32 %v364, 4294901760
        %v654 = vsub.f32 %v364, %v653
        %v655 = vand.u32 %v654, 4294901760
        %v656 = vsub.f32 %v654, %v655
        %v657 = vand.u32 %v656, 4294901760
        %658 = vmatprep.subr.mxu0 %v657
        %v659 = vand.u32 %v363, 4294901760
        %v660 = vsub.f32 %v363, %v659
        %v661 = vand.u32 %v660, 4294901760
        %v662 = vsub.f32 %v660, %v661
        %v663 = vand.u32 %v662, 4294901760
        %664 = vmatpush1.msra.mxu0 %v663
        %665 = vmatprep.subr.mxu0 0.0
        %666 = vmatpush1.msra.mxu0 0.0
        %667 = vmatprep.subr.mxu0 0.0
        %668 = vmatpush1.msra.mxu0 0.0
        %669 = vmatprep.subr.mxu0 0.0
        %670 = vmatpush1.msra.mxu0 0.0
        %671 = vmatprep.subr.mxu0 0.0
        %672 = vmatpush1.msra.mxu0 0.0
        %673 = vmatprep.subr.mxu0 0.0
        %674 = vmatpush1.msra.mxu0 0.0
        %675 = vmatprep.subr.mxu0 0.0
        %676 = vmatpush1.msra.mxu0 0.0
        %677 = vmatprep.subr.mxu0 0.0
        %678 = vmatpush1.msra.mxu0 0.0
        %679 = vmatprep.subr.mxu0 0.0
        %680 = vmatpush1.msra.mxu0 0.0
        %681 = vmatprep.subr.mxu0 0.0
        %682 = vmatpush1.msra.mxu0 0.0
        %683 = vmatprep.subr.mxu0 0.0
        %684 = vmatpush1.msra.mxu0 0.0
        %685 = vmatprep.subr.mxu0 0.0
        %686 = vmatpush1.msra.mxu0 0.0
        %687 = vmatprep.subr.mxu0 0.0
        %688 = vmatpush1.msra.mxu0 0.0
        %689 = vmatprep.subr.mxu0 0.0
        %690 = vmatpush1.msra.mxu0 0.0
        %691 = vmatprep.subr.mxu0 0.0
        %692 = vmatpush1.msra.mxu0 0.0
        %693 = vmatprep.subr.mxu0 0.0
        %694 = vmatpush1.msra.mxu0 0.0
        %695 = vmatprep.subr.mxu0 0.0
        %696 = vmatpush1.msra.mxu0 0.0
        %697 = vmatprep.mubr.f32.mxu0 0.0
        %v698 = vand.u32 %v332, 4294901760
        %699 = vmatmul.mubr.f32.gmra.mrb[0].mxu0 %v698
        %v700 = vpop.f32.mrb[0].mxu0
        %v701 = vadd.f32 %v469, %v700
        %v702 = vpop.f32.mrb[0].mxu0
        %v703 = vadd.f32 %v471, %v702
        %704 = vdwg.mxu0
        %v705 = vand.u32 %v334, 4294901760
        %v706 = vsub.f32 %v334, %v705
        %707 = vmatprep.subr.mxu0 %v706
        %v708 = vand.u32 %v333, 4294901760
        %v709 = vsub.f32 %v333, %v708
        %710 = vmatpush1.msra.mxu0 %v709
        %v711 = vand.u32 %v336, 4294901760
        %v712 = vsub.f32 %v336, %v711
        %713 = vmatprep.subr.mxu0 %v712
        %v714 = vand.u32 %v335, 4294901760
        %v715 = vsub.f32 %v335, %v714
        %716 = vmatpush1.msra.mxu0 %v715
        %v717 = vand.u32 %v338, 4294901760
        %v718 = vsub.f32 %v338, %v717
        %719 = vmatprep.subr.mxu0 %v718
        %v720 = vand.u32 %v337, 4294901760
        %v721 = vsub.f32 %v337, %v720
        %722 = vmatpush1.msra.mxu0 %v721
        %v723 = vand.u32 %v340, 4294901760
        %v724 = vsub.f32 %v340, %v723
        %725 = vmatprep.subr.mxu0 %v724
        %v726 = vand.u32 %v339, 4294901760
        %v727 = vsub.f32 %v339, %v726
        %728 = vmatpush1.msra.mxu0 %v727
        %v729 = vand.u32 %v342, 4294901760
        %v730 = vsub.f32 %v342, %v729
        %731 = vmatprep.subr.mxu0 %v730
        %v732 = vand.u32 %v341, 4294901760
        %v733 = vsub.f32 %v341, %v732
        %734 = vmatpush1.msra.mxu0 %v733
        %v735 = vand.u32 %v344, 4294901760
        %v736 = vsub.f32 %v344, %v735
        %737 = vmatprep.subr.mxu0 %v736
        %v738 = vand.u32 %v343, 4294901760
        %v739 = vsub.f32 %v343, %v738
        %740 = vmatpush1.msra.mxu0 %v739
        %v741 = vand.u32 %v346, 4294901760
        %v742 = vsub.f32 %v346, %v741
        %743 = vmatprep.subr.mxu0 %v742
        %v744 = vand.u32 %v345, 4294901760
        %v745 = vsub.f32 %v345, %v744
        %746 = vmatpush1.msra.mxu0 %v745
        %v747 = vand.u32 %v348, 4294901760
        %v748 = vsub.f32 %v348, %v747
        %749 = vmatprep.subr.mxu0 %v748
        %v750 = vand.u32 %v347, 4294901760
        %v751 = vsub.f32 %v347, %v750
        %752 = vmatpush1.msra.mxu0 %v751
        %v753 = vand.u32 %v350, 4294901760
        %v754 = vsub.f32 %v350, %v753
        %755 = vmatprep.subr.mxu0 %v754
        %v756 = vand.u32 %v349, 4294901760
        %v757 = vsub.f32 %v349, %v756
        %758 = vmatpush1.msra.mxu0 %v757
        %v759 = vand.u32 %v352, 4294901760
        %v760 = vsub.f32 %v352, %v759
        %761 = vmatprep.subr.mxu0 %v760
        %v762 = vand.u32 %v351, 4294901760
        %v763 = vsub.f32 %v351, %v762
        %764 = vmatpush1.msra.mxu0 %v763
        %v765 = vand.u32 %v354, 4294901760
        %v766 = vsub.f32 %v354, %v765
        %767 = vmatprep.subr.mxu0 %v766
        %v768 = vand.u32 %v353, 4294901760
        %v769 = vsub.f32 %v353, %v768
        %770 = vmatpush1.msra.mxu0 %v769
        %v771 = vand.u32 %v356, 4294901760
        %v772 = vsub.f32 %v356, %v771
        %773 = vmatprep.subr.mxu0 %v772
        %v774 = vand.u32 %v355, 4294901760
        %v775 = vsub.f32 %v355, %v774
        %776 = vmatpush1.msra.mxu0 %v775
        %v777 = vand.u32 %v358, 4294901760
        %v778 = vsub.f32 %v358, %v777
        %779 = vmatprep.subr.mxu0 %v778
        %v780 = vand.u32 %v357, 4294901760
        %v781 = vsub.f32 %v357, %v780
        %782 = vmatpush1.msra.mxu0 %v781
        %v783 = vand.u32 %v360, 4294901760
        %v784 = vsub.f32 %v360, %v783
        %785 = vmatprep.subr.mxu0 %v784
        %v786 = vand.u32 %v359, 4294901760
        %v787 = vsub.f32 %v359, %v786
        %788 = vmatpush1.msra.mxu0 %v787
        %v789 = vand.u32 %v362, 4294901760
        %v790 = vsub.f32 %v362, %v789
        %791 = vmatprep.subr.mxu0 %v790
        %v792 = vand.u32 %v361, 4294901760
        %v793 = vsub.f32 %v361, %v792
        %794 = vmatpush1.msra.mxu0 %v793
        %v795 = vand.u32 %v364, 4294901760
        %v796 = vsub.f32 %v364, %v795
        %797 = vmatprep.subr.mxu0 %v796
        %v798 = vand.u32 %v363, 4294901760
        %v799 = vsub.f32 %v363, %v798
        %800 = vmatpush1.msra.mxu0 %v799
        %801 = vmatprep.subr.mxu0 0.0
        %802 = vmatpush1.msra.mxu0 0.0
        %803 = vmatprep.subr.mxu0 0.0
        %804 = vmatpush1.msra.mxu0 0.0
        %805 = vmatprep.subr.mxu0 0.0
        %806 = vmatpush1.msra.mxu0 0.0
        %807 = vmatprep.subr.mxu0 0.0
        %808 = vmatpush1.msra.mxu0 0.0
        %809 = vmatprep.subr.mxu0 0.0
        %810 = vmatpush1.msra.mxu0 0.0
        %811 = vmatprep.subr.mxu0 0.0
        %812 = vmatpush1.msra.mxu0 0.0
        %813 = vmatprep.subr.mxu0 0.0
        %814 = vmatpush1.msra.mxu0 0.0
        %815 = vmatprep.subr.mxu0 0.0
        %816 = vmatpush1.msra.mxu0 0.0
        %817 = vmatprep.subr.mxu0 0.0
        %818 = vmatpush1.msra.mxu0 0.0
        %819 = vmatprep.subr.mxu0 0.0
        %820 = vmatpush1.msra.mxu0 0.0
        %821 = vmatprep.subr.mxu0 0.0
        %822 = vmatpush1.msra.mxu0 0.0
        %823 = vmatprep.subr.mxu0 0.0
        %824 = vmatpush1.msra.mxu0 0.0
        %825 = vmatprep.subr.mxu0 0.0
        %826 = vmatpush1.msra.mxu0 0.0
        %827 = vmatprep.subr.mxu0 0.0
        %828 = vmatpush1.msra.mxu0 0.0
        %829 = vmatprep.subr.mxu0 0.0
        %830 = vmatpush1.msra.mxu0 0.0
        %831 = vmatprep.subr.mxu0 0.0
        %832 = vmatpush1.msra.mxu0 0.0
        %833 = vmatprep.mubr.f32.mxu0 0.0
        %v834 = vand.u32 %v332, 4294901760
        %v835 = vsub.f32 %v332, %v834
        %836 = vmatmul.mubr.f32.gmra.mrb[0].mxu0 %v835
        %v837 = vpop.f32.mrb[0].mxu0
        %v838 = vadd.f32 %v701, %v837
        %v839 = vpop.f32.mrb[0].mxu0
        %v840 = vadd.f32 %v703, %v839
        %841 = vdwg.mxu0
        %v842 = vand.u32 %v334, 4294901760
        %843 = vmatprep.subr.mxu0 %v842
        %v844 = vand.u32 %v333, 4294901760
        %845 = vmatpush1.msra.mxu0 %v844
        %v846 = vand.u32 %v336, 4294901760
        %847 = vmatprep.subr.mxu0 %v846
        %v848 = vand.u32 %v335, 4294901760
        %849 = vmatpush1.msra.mxu0 %v848
        %v850 = vand.u32 %v338, 4294901760
        %851 = vmatprep.subr.mxu0 %v850
        %v852 = vand.u32 %v337, 4294901760
        %853 = vmatpush1.msra.mxu0 %v852
        %v854 = vand.u32 %v340, 4294901760
        %855 = vmatprep.subr.mxu0 %v854
        %v856 = vand.u32 %v339, 4294901760
        %857 = vmatpush1.msra.mxu0 %v856
        %v858 = vand.u32 %v342, 4294901760
        %859 = vmatprep.subr.mxu0 %v858
        %v860 = vand.u32 %v341, 4294901760
        %861 = vmatpush1.msra.mxu0 %v860
        %v862 = vand.u32 %v344, 4294901760
        %863 = vmatprep.subr.mxu0 %v862
        %v864 = vand.u32 %v343, 4294901760
        %865 = vmatpush1.msra.mxu0 %v864
        %v866 = vand.u32 %v346, 4294901760
        %867 = vmatprep.subr.mxu0 %v866
        %v868 = vand.u32 %v345, 4294901760
        %869 = vmatpush1.msra.mxu0 %v868
        %v870 = vand.u32 %v348, 4294901760
        %871 = vmatprep.subr.mxu0 %v870
        %v872 = vand.u32 %v347, 4294901760
        %873 = vmatpush1.msra.mxu0 %v872
        %v874 = vand.u32 %v350, 4294901760
        %875 = vmatprep.subr.mxu0 %v874
        %v876 = vand.u32 %v349, 4294901760
        %877 = vmatpush1.msra.mxu0 %v876
        %v878 = vand.u32 %v352, 4294901760
        %879 = vmatprep.subr.mxu0 %v878
        %v880 = vand.u32 %v351, 4294901760
        %881 = vmatpush1.msra.mxu0 %v880
        %v882 = vand.u32 %v354, 4294901760
        %883 = vmatprep.subr.mxu0 %v882
        %v884 = vand.u32 %v353, 4294901760
        %885 = vmatpush1.msra.mxu0 %v884
        %v886 = vand.u32 %v356, 4294901760
        %887 = vmatprep.subr.mxu0 %v886
        %v888 = vand.u32 %v355, 4294901760
        %889 = vmatpush1.msra.mxu0 %v888
        %v890 = vand.u32 %v358, 4294901760
        %891 = vmatprep.subr.mxu0 %v890
        %v892 = vand.u32 %v357, 4294901760
        %893 = vmatpush1.msra.mxu0 %v892
        %v894 = vand.u32 %v360, 4294901760
        %895 = vmatprep.subr.mxu0 %v894
        %v896 = vand.u32 %v359, 4294901760
        %897 = vmatpush1.msra.mxu0 %v896
        %v898 = vand.u32 %v362, 4294901760
        %899 = vmatprep.subr.mxu0 %v898
        %v900 = vand.u32 %v361, 4294901760
        %901 = vmatpush1.msra.mxu0 %v900
        %v902 = vand.u32 %v364, 4294901760
        %903 = vmatprep.subr.mxu0 %v902
        %v904 = vand.u32 %v363, 4294901760
        %905 = vmatpush1.msra.mxu0 %v904
        %906 = vmatprep.subr.mxu0 0.0
        %907 = vmatpush1.msra.mxu0 0.0
        %908 = vmatprep.subr.mxu0 0.0
        %909 = vmatpush1.msra.mxu0 0.0
        %910 = vmatprep.subr.mxu0 0.0
        %911 = vmatpush1.msra.mxu0 0.0
        %912 = vmatprep.subr.mxu0 0.0
        %913 = vmatpush1.msra.mxu0 0.0
        %914 = vmatprep.subr.mxu0 0.0
        %915 = vmatpush1.msra.mxu0 0.0
        %916 = vmatprep.subr.mxu0 0.0
        %917 = vmatpush1.msra.mxu0 0.0
        %918 = vmatprep.subr.mxu0 0.0
        %919 = vmatpush1.msra.mxu0 0.0
        %920 = vmatprep.subr.mxu0 0.0
        %921 = vmatpush1.msra.mxu0 0.0
        %922 = vmatprep.subr.mxu0 0.0
        %923 = vmatpush1.msra.mxu0 0.0
        %924 = vmatprep.subr.mxu0 0.0
        %925 = vmatpush1.msra.mxu0 0.0
        %926 = vmatprep.subr.mxu0 0.0
        %927 = vmatpush1.msra.mxu0 0.0
        %928 = vmatprep.subr.mxu0 0.0
        %929 = vmatpush1.msra.mxu0 0.0
        %930 = vmatprep.subr.mxu0 0.0
        %931 = vmatpush1.msra.mxu0 0.0
        %932 = vmatprep.subr.mxu0 0.0
        %933 = vmatpush1.msra.mxu0 0.0
        %934 = vmatprep.subr.mxu0 0.0
        %935 = vmatpush1.msra.mxu0 0.0
        %936 = vmatprep.subr.mxu0 0.0
        %937 = vmatpush1.msra.mxu0 0.0
        %938 = vmatprep.mubr.f32.mxu0 0.0
        %v939 = vand.u32 %v332, 4294901760
        %v940 = vsub.f32 %v332, %v939
        %v941 = vand.u32 %v940, 4294901760
        %942 = vmatmul.mubr.f32.gmra.mrb[0].mxu0 %v941
        %v943 = vpop.f32.mrb[0].mxu0
        %v944 = vadd.f32 %v838, %v943
        %v945 = vpop.f32.mrb[0].mxu0
        %v946 = vadd.f32 %v840, %v945
        %947 = vdwg.mxu0
        %v948 = vand.u32 %v334, 4294901760
        %v949 = vsub.f32 %v334, %v948
        %v950 = vand.u32 %v949, 4294901760
        %951 = vmatprep.subr.mxu0 %v950
        %v952 = vand.u32 %v333, 4294901760
        %v953 = vsub.f32 %v333, %v952
        %v954 = vand.u32 %v953, 4294901760
        %955 = vmatpush1.msra.mxu0 %v954
        %v956 = vand.u32 %v336, 4294901760
        %v957 = vsub.f32 %v336, %v956
        %v958 = vand.u32 %v957, 4294901760
        %959 = vmatprep.subr.mxu0 %v958
        %v960 = vand.u32 %v335, 4294901760
        %v961 = vsub.f32 %v335, %v960
        %v962 = vand.u32 %v961, 4294901760
        %963 = vmatpush1.msra.mxu0 %v962
        %v964 = vand.u32 %v338, 4294901760
        %v965 = vsub.f32 %v338, %v964
        %v966 = vand.u32 %v965, 4294901760
        %967 = vmatprep.subr.mxu0 %v966
        %v968 = vand.u32 %v337, 4294901760
        %v969 = vsub.f32 %v337, %v968
        %v970 = vand.u32 %v969, 4294901760
        %971 = vmatpush1.msra.mxu0 %v970
        %v972 = vand.u32 %v340, 4294901760
        %v973 = vsub.f32 %v340, %v972
        %v974 = vand.u32 %v973, 4294901760
        %975 = vmatprep.subr.mxu0 %v974
        %v976 = vand.u32 %v339, 4294901760
        %v977 = vsub.f32 %v339, %v976
        %v978 = vand.u32 %v977, 4294901760
        %979 = vmatpush1.msra.mxu0 %v978
        %v980 = vand.u32 %v342, 4294901760
        %v981 = vsub.f32 %v342, %v980
        %v982 = vand.u32 %v981, 4294901760
        %983 = vmatprep.subr.mxu0 %v982
        %v984 = vand.u32 %v341, 4294901760
        %v985 = vsub.f32 %v341, %v984
        %v986 = vand.u32 %v985, 4294901760
        %987 = vmatpush1.msra.mxu0 %v986
        %v988 = vand.u32 %v344, 4294901760
        %v989 = vsub.f32 %v344, %v988
        %v990 = vand.u32 %v989, 4294901760
        %991 = vmatprep.subr.mxu0 %v990
        %v992 = vand.u32 %v343, 4294901760
        %v993 = vsub.f32 %v343, %v992
        %v994 = vand.u32 %v993, 4294901760
        %995 = vmatpush1.msra.mxu0 %v994
        %v996 = vand.u32 %v346, 4294901760
        %v997 = vsub.f32 %v346, %v996
        %v998 = vand.u32 %v997, 4294901760
        %999 = vmatprep.subr.mxu0 %v998
        %v1000 = vand.u32 %v345, 4294901760
        %v1001 = vsub.f32 %v345, %v1000
        %v1002 = vand.u32 %v1001, 4294901760
        %1003 = vmatpush1.msra.mxu0 %v1002
        %v1004 = vand.u32 %v348, 4294901760
        %v1005 = vsub.f32 %v348, %v1004
        %v1006 = vand.u32 %v1005, 4294901760
        %1007 = vmatprep.subr.mxu0 %v1006
        %v1008 = vand.u32 %v347, 4294901760
        %v1009 = vsub.f32 %v347, %v1008
        %v1010 = vand.u32 %v1009, 4294901760
        %1011 = vmatpush1.msra.mxu0 %v1010
        %v1012 = vand.u32 %v350, 4294901760
        %v1013 = vsub.f32 %v350, %v1012
        %v1014 = vand.u32 %v1013, 4294901760
        %1015 = vmatprep.subr.mxu0 %v1014
        %v1016 = vand.u32 %v349, 4294901760
        %v1017 = vsub.f32 %v349, %v1016
        %v1018 = vand.u32 %v1017, 4294901760
        %1019 = vmatpush1.msra.mxu0 %v1018
        %v1020 = vand.u32 %v352, 4294901760
        %v1021 = vsub.f32 %v352, %v1020
        %v1022 = vand.u32 %v1021, 4294901760
        %1023 = vmatprep.subr.mxu0 %v1022
        %v1024 = vand.u32 %v351, 4294901760
        %v1025 = vsub.f32 %v351, %v1024
        %v1026 = vand.u32 %v1025, 4294901760
        %1027 = vmatpush1.msra.mxu0 %v1026
        %v1028 = vand.u32 %v354, 4294901760
        %v1029 = vsub.f32 %v354, %v1028
        %v1030 = vand.u32 %v1029, 4294901760
        %1031 = vmatprep.subr.mxu0 %v1030
        %v1032 = vand.u32 %v353, 4294901760
        %v1033 = vsub.f32 %v353, %v1032
        %v1034 = vand.u32 %v1033, 4294901760
        %1035 = vmatpush1.msra.mxu0 %v1034
        %v1036 = vand.u32 %v356, 4294901760
        %v1037 = vsub.f32 %v356, %v1036
        %v1038 = vand.u32 %v1037, 4294901760
        %1039 = vmatprep.subr.mxu0 %v1038
        %v1040 = vand.u32 %v355, 4294901760
        %v1041 = vsub.f32 %v355, %v1040
        %v1042 = vand.u32 %v1041, 4294901760
        %1043 = vmatpush1.msra.mxu0 %v1042
        %v1044 = vand.u32 %v358, 4294901760
        %v1045 = vsub.f32 %v358, %v1044
        %v1046 = vand.u32 %v1045, 4294901760
        %1047 = vmatprep.subr.mxu0 %v1046
        %v1048 = vand.u32 %v357, 4294901760
        %v1049 = vsub.f32 %v357, %v1048
        %v1050 = vand.u32 %v1049, 4294901760
        %1051 = vmatpush1.msra.mxu0 %v1050
        %v1052 = vand.u32 %v360, 4294901760
        %v1053 = vsub.f32 %v360, %v1052
        %v1054 = vand.u32 %v1053, 4294901760
        %1055 = vmatprep.subr.mxu0 %v1054
        %v1056 = vand.u32 %v359, 4294901760
        %v1057 = vsub.f32 %v359, %v1056
        %v1058 = vand.u32 %v1057, 4294901760
        %1059 = vmatpush1.msra.mxu0 %v1058
        %v1060 = vand.u32 %v362, 4294901760
        %v1061 = vsub.f32 %v362, %v1060
        %v1062 = vand.u32 %v1061, 4294901760
        %1063 = vmatprep.subr.mxu0 %v1062
        %v1064 = vand.u32 %v361, 4294901760
        %v1065 = vsub.f32 %v361, %v1064
        %v1066 = vand.u32 %v1065, 4294901760
        %1067 = vmatpush1.msra.mxu0 %v1066
        %v1068 = vand.u32 %v364, 4294901760
        %v1069 = vsub.f32 %v364, %v1068
        %v1070 = vand.u32 %v1069, 4294901760
        %1071 = vmatprep.subr.mxu0 %v1070
        %v1072 = vand.u32 %v363, 4294901760
        %v1073 = vsub.f32 %v363, %v1072
        %v1074 = vand.u32 %v1073, 4294901760
        %1075 = vmatpush1.msra.mxu0 %v1074
        %1076 = vmatprep.subr.mxu0 0.0
        %1077 = vmatpush1.msra.mxu0 0.0
        %1078 = vmatprep.subr.mxu0 0.0
        %1079 = vmatpush1.msra.mxu0 0.0
        %1080 = vmatprep.subr.mxu0 0.0
        %1081 = vmatpush1.msra.mxu0 0.0
        %1082 = vmatprep.subr.mxu0 0.0
        %1083 = vmatpush1.msra.mxu0 0.0
        %1084 = vmatprep.subr.mxu0 0.0
        %1085 = vmatpush1.msra.mxu0 0.0
        %1086 = vmatprep.subr.mxu0 0.0
        %1087 = vmatpush1.msra.mxu0 0.0
        %1088 = vmatprep.subr.mxu0 0.0
        %1089 = vmatpush1.msra.mxu0 0.0
        %1090 = vmatprep.subr.mxu0 0.0
        %1091 = vmatpush1.msra.mxu0 0.0
        %1092 = vmatprep.subr.mxu0 0.0
        %1093 = vmatpush1.msra.mxu0 0.0
        %1094 = vmatprep.subr.mxu0 0.0
        %1095 = vmatpush1.msra.mxu0 0.0
        %1096 = vmatprep.subr.mxu0 0.0
        %1097 = vmatpush1.msra.mxu0 0.0
        %1098 = vmatprep.subr.mxu0 0.0
        %1099 = vmatpush1.msra.mxu0 0.0
        %1100 = vmatprep.subr.mxu0 0.0
        %1101 = vmatpush1.msra.mxu0 0.0
        %1102 = vmatprep.subr.mxu0 0.0
        %1103 = vmatpush1.msra.mxu0 0.0
        %1104 = vmatprep.subr.mxu0 0.0
        %1105 = vmatpush1.msra.mxu0 0.0
        %1106 = vmatprep.subr.mxu0 0.0
        %1107 = vmatpush1.msra.mxu0 0.0
        %1108 = vmatprep.mubr.f32.mxu0 0.0
        %v1109 = vand.u32 %v332, 4294901760
        %1110 = vmatmul.mubr.f32.gmra.mrb[0].mxu0 %v1109
        %v1111 = vpop.f32.mrb[0].mxu0
        %v1112 = vadd.f32 %v944, %v1111
        %v1113 = vpop.f32.mrb[0].mxu0
        %v1114 = vadd.f32 %v946, %v1113
        %1115 = vdwg.mxu0
        %v1116 = vand.u32 %v334, 4294901760
        %1117 = vmatprep.subr.mxu0 %v1116
        %v1118 = vand.u32 %v333, 4294901760
        %1119 = vmatpush1.msra.mxu0 %v1118
        %v1120 = vand.u32 %v336, 4294901760
        %1121 = vmatprep.subr.mxu0 %v1120
        %v1122 = vand.u32 %v335, 4294901760
        %1123 = vmatpush1.msra.mxu0 %v1122
        %v1124 = vand.u32 %v338, 4294901760
        %1125 = vmatprep.subr.mxu0 %v1124
        %v1126 = vand.u32 %v337, 4294901760
        %1127 = vmatpush1.msra.mxu0 %v1126
        %v1128 = vand.u32 %v340, 4294901760
        %1129 = vmatprep.subr.mxu0 %v1128
        %v1130 = vand.u32 %v339, 4294901760
        %1131 = vmatpush1.msra.mxu0 %v1130
        %v1132 = vand.u32 %v342, 4294901760
        %1133 = vmatprep.subr.mxu0 %v1132
        %v1134 = vand.u32 %v341, 4294901760
        %1135 = vmatpush1.msra.mxu0 %v1134
        %v1136 = vand.u32 %v344, 4294901760
        %1137 = vmatprep.subr.mxu0 %v1136
        %v1138 = vand.u32 %v343, 4294901760
        %1139 = vmatpush1.msra.mxu0 %v1138
        %v1140 = vand.u32 %v346, 4294901760
        %1141 = vmatprep.subr.mxu0 %v1140
        %v1142 = vand.u32 %v345, 4294901760
        %1143 = vmatpush1.msra.mxu0 %v1142
        %v1144 = vand.u32 %v348, 4294901760
        %1145 = vmatprep.subr.mxu0 %v1144
        %v1146 = vand.u32 %v347, 4294901760
        %1147 = vmatpush1.msra.mxu0 %v1146
        %v1148 = vand.u32 %v350, 4294901760
        %1149 = vmatprep.subr.mxu0 %v1148
        %v1150 = vand.u32 %v349, 4294901760
        %1151 = vmatpush1.msra.mxu0 %v1150
        %v1152 = vand.u32 %v352, 4294901760
        %1153 = vmatprep.subr.mxu0 %v1152
        %v1154 = vand.u32 %v351, 4294901760
        %1155 = vmatpush1.msra.mxu0 %v1154
        %v1156 = vand.u32 %v354, 4294901760
        %1157 = vmatprep.subr.mxu0 %v1156
        %v1158 = vand.u32 %v353, 4294901760
        %1159 = vmatpush1.msra.mxu0 %v1158
        %v1160 = vand.u32 %v356, 4294901760
        %1161 = vmatprep.subr.mxu0 %v1160
        %v1162 = vand.u32 %v355, 4294901760
        %1163 = vmatpush1.msra.mxu0 %v1162
        %v1164 = vand.u32 %v358, 4294901760
        %1165 = vmatprep.subr.mxu0 %v1164
        %v1166 = vand.u32 %v357, 4294901760
        %1167 = vmatpush1.msra.mxu0 %v1166
        %v1168 = vand.u32 %v360, 4294901760
        %1169 = vmatprep.subr.mxu0 %v1168
        %v1170 = vand.u32 %v359, 4294901760
        %1171 = vmatpush1.msra.mxu0 %v1170
        %v1172 = vand.u32 %v362, 4294901760
        %1173 = vmatprep.subr.mxu0 %v1172
        %v1174 = vand.u32 %v361, 4294901760
        %1175 = vmatpush1.msra.mxu0 %v1174
        %v1176 = vand.u32 %v364, 4294901760
        %1177 = vmatprep.subr.mxu0 %v1176
        %v1178 = vand.u32 %v363, 4294901760
        %1179 = vmatpush1.msra.mxu0 %v1178
        %1180 = vmatprep.subr.mxu0 0.0
        %1181 = vmatpush1.msra.mxu0 0.0
        %1182 = vmatprep.subr.mxu0 0.0
        %1183 = vmatpush1.msra.mxu0 0.0
        %1184 = vmatprep.subr.mxu0 0.0
        %1185 = vmatpush1.msra.mxu0 0.0
        %1186 = vmatprep.subr.mxu0 0.0
        %1187 = vmatpush1.msra.mxu0 0.0
        %1188 = vmatprep.subr.mxu0 0.0
        %1189 = vmatpush1.msra.mxu0 0.0
        %1190 = vmatprep.subr.mxu0 0.0
        %1191 = vmatpush1.msra.mxu0 0.0
        %1192 = vmatprep.subr.mxu0 0.0
        %1193 = vmatpush1.msra.mxu0 0.0
        %1194 = vmatprep.subr.mxu0 0.0
        %1195 = vmatpush1.msra.mxu0 0.0
        %1196 = vmatprep.subr.mxu0 0.0
        %1197 = vmatpush1.msra.mxu0 0.0
        %1198 = vmatprep.subr.mxu0 0.0
        %1199 = vmatpush1.msra.mxu0 0.0
        %1200 = vmatprep.subr.mxu0 0.0
        %1201 = vmatpush1.msra.mxu0 0.0
        %1202 = vmatprep.subr.mxu0 0.0
        %1203 = vmatpush1.msra.mxu0 0.0
        %1204 = vmatprep.subr.mxu0 0.0
        %1205 = vmatpush1.msra.mxu0 0.0
        %1206 = vmatprep.subr.mxu0 0.0
        %1207 = vmatpush1.msra.mxu0 0.0
        %1208 = vmatprep.subr.mxu0 0.0
        %1209 = vmatpush1.msra.mxu0 0.0
        %1210 = vmatprep.subr.mxu0 0.0
        %1211 = vmatpush1.msra.mxu0 0.0
        %1212 = vmatprep.mubr.f32.mxu0 0.0
        %v1213 = vand.u32 %v332, 4294901760
        %1214 = vmatmul.mubr.f32.gmra.mrb[0].mxu0 %v1213
        %v1215 = vpop.f32.mrb[0].mxu0
        %v1216 = vadd.f32 %v1112, %v1215
        %v1217 = vpop.f32.mrb[0].mxu0
        %v1218 = vadd.f32 %v1114, %v1217
        %1219 = vdwg.mxu0
        %v1220 = vmul.f32 %v332, %v332
        %v1221 = vld [vmem:[#allocation7] sm:$0xff]
        %v1222 = vld [vmem:[#allocation7 + $0x8] sm:$0xff]
        %v1223 = vld [vmem:[#allocation7 + $0x10] sm:$0xff]
        %v1224 = vld [vmem:[#allocation7 + $0x18] sm:$0xff]
        %v1225 = vld [vmem:[#allocation7 + $0x20] sm:$0xff]
        %v1226 = vld [vmem:[#allocation7 + $0x28] sm:$0xff]
        %v1227 = vld [vmem:[#allocation7 + $0x30] sm:$0xff]
        %v1228 = vld [vmem:[#allocation7 + $0x38] sm:$0xff]
        %v1229 = vld [vmem:[#allocation7 + $0x40] sm:$0xff]
        %v1230 = vld [vmem:[#allocation7 + $0x48] sm:$0xff]
        %v1231 = vld [vmem:[#allocation7 + $0x50] sm:$0xff]
        %v1232 = vld [vmem:[#allocation7 + $0x58] sm:$0xff]
        %v1233 = vld [vmem:[#allocation7 + $0x60] sm:$0xff]
        %v1234 = vld [vmem:[#allocation7 + $0x68] sm:$0xff]
        %v1235 = vld [vmem:[#allocation7 + $0x70] sm:$0xff]
        %v1236 = vld [vmem:[#allocation7 + $0x78] sm:$0xff]
        %v1237 = vld [vmem:[%s327] sm:$0x1]
        %v1239 = vlaneseq
        %v1240 = vshrl.u32 %v1239, 7
        %v1241 = vsub.s32 0, %v1240
        %v1242 = vrot.slane %v1237, %v1241
        %v1244 = vadd.f32 %v1216, %v1242
        %v1245 = vld [vmem:[%s327 + $0x1] sm:$0x1]
        %v1247 = vlaneseq
        %v1248 = vshrl.u32 %v1247, 7
        %v1249 = vsub.s32 0, %v1248
        %v1250 = vrot.slane %v1245, %v1249
        %v1252 = vadd.f32 %v1218, %v1250
        %v1253 = vld [vmem:[%s331] sm:$0x1]
        %v1255 = vlaneseq
        %v1256 = vshrl.u32 %v1255, 7
        %v1257 = vsub.s32 0, %v1256
        %v1258 = vrot.slane %v1253, %v1257
        %1260 = vmatprep.subr.mxu0 0.0
        %v1261 = vand.u32 %v1221, 4294901760
        %1262 = vmatpush1.msra.mxu0 %v1261
        %1263 = vmatprep.subr.mxu0 0.0
        %v1264 = vand.u32 %v1222, 4294901760
        %1265 = vmatpush1.msra.mxu0 %v1264
        %1266 = vmatprep.subr.mxu0 0.0
        %v1267 = vand.u32 %v1223, 4294901760
        %1268 = vmatpush1.msra.mxu0 %v1267
        %1269 = vmatprep.subr.mxu0 0.0
        %v1270 = vand.u32 %v1224, 4294901760
        %1271 = vmatpush1.msra.mxu0 %v1270
        %1272 = vmatprep.subr.mxu0 0.0
        %v1273 = vand.u32 %v1225, 4294901760
        %1274 = vmatpush1.msra.mxu0 %v1273
        %1275 = vmatprep.subr.mxu0 0.0
        %v1276 = vand.u32 %v1226, 4294901760
        %1277 = vmatpush1.msra.mxu0 %v1276
        %1278 = vmatprep.subr.mxu0 0.0
        %v1279 = vand.u32 %v1227, 4294901760
        %1280 = vmatpush1.msra.mxu0 %v1279
        %1281 = vmatprep.subr.mxu0 0.0
        %v1282 = vand.u32 %v1228, 4294901760
        %1283 = vmatpush1.msra.mxu0 %v1282
        %1284 = vmatprep.subr.mxu0 0.0
        %v1285 = vand.u32 %v1229, 4294901760
        %1286 = vmatpush1.msra.mxu0 %v1285
        %1287 = vmatprep.subr.mxu0 0.0
        %v1288 = vand.u32 %v1230, 4294901760
        %1289 = vmatpush1.msra.mxu0 %v1288
        %1290 = vmatprep.subr.mxu0 0.0
        %v1291 = vand.u32 %v1231, 4294901760
        %1292 = vmatpush1.msra.mxu0 %v1291
        %1293 = vmatprep.subr.mxu0 0.0
        %v1294 = vand.u32 %v1232, 4294901760
        %1295 = vmatpush1.msra.mxu0 %v1294
        %1296 = vmatprep.subr.mxu0 0.0
        %v1297 = vand.u32 %v1233, 4294901760
        %1298 = vmatpush1.msra.mxu0 %v1297
        %1299 = vmatprep.subr.mxu0 0.0
        %v1300 = vand.u32 %v1234, 4294901760
        %1301 = vmatpush1.msra.mxu0 %v1300
        %1302 = vmatprep.subr.mxu0 0.0
        %v1303 = vand.u32 %v1235, 4294901760
        %1304 = vmatpush1.msra.mxu0 %v1303
        %1305 = vmatprep.subr.mxu0 0.0
        %v1306 = vand.u32 %v1236, 4294901760
        %1307 = vmatpush1.msra.mxu0 %v1306
        %1308 = vmatprep.subr.mxu0 0.0
        %1309 = vmatpush1.msra.mxu0 0.0
        %1310 = vmatprep.subr.mxu0 0.0
        %1311 = vmatpush1.msra.mxu0 0.0
        %1312 = vmatprep.subr.mxu0 0.0
        %1313 = vmatpush1.msra.mxu0 0.0
        %1314 = vmatprep.subr.mxu0 0.0
        %1315 = vmatpush1.msra.mxu0 0.0
        %1316 = vmatprep.subr.mxu0 0.0
        %1317 = vmatpush1.msra.mxu0 0.0
        %1318 = vmatprep.subr.mxu0 0.0
        %1319 = vmatpush1.msra.mxu0 0.0
        %1320 = vmatprep.subr.mxu0 0.0
        %1321 = vmatpush1.msra.mxu0 0.0
        %1322 = vmatprep.subr.mxu0 0.0
        %1323 = vmatpush1.msra.mxu0 0.0
        %1324 = vmatprep.subr.mxu0 0.0
        %1325 = vmatpush1.msra.mxu0 0.0
        %1326 = vmatprep.subr.mxu0 0.0
        %1327 = vmatpush1.msra.mxu0 0.0
        %1328 = vmatprep.subr.mxu0 0.0
        %1329 = vmatpush1.msra.mxu0 0.0
        %1330 = vmatprep.subr.mxu0 0.0
        %1331 = vmatpush1.msra.mxu0 0.0
        %1332 = vmatprep.subr.mxu0 0.0
        %1333 = vmatpush1.msra.mxu0 0.0
        %1334 = vmatprep.subr.mxu0 0.0
        %1335 = vmatpush1.msra.mxu0 0.0
        %1336 = vmatprep.subr.mxu0 0.0
        %1337 = vmatpush1.msra.mxu0 0.0
        %1338 = vmatprep.subr.mxu0 0.0
        %1339 = vmatpush1.msra.mxu0 0.0
        %1340 = vmatprep.mubr.f32.mxu0 0.0
        %v1341 = vand.u32 %v1220, 4294901760
        %v1342 = vsub.f32 %v1220, %v1341
        %v1343 = vand.u32 %v1342, 4294901760
        %v1344 = vsub.f32 %v1342, %v1343
        %v1345 = vand.u32 %v1344, 4294901760
        %1346 = vmatmul.mubr.f32.gmra.mrb[0].mxu0 %v1345
        %v1347 = vpop.f32.mrb[0].mxu0
        %v1348 = vadd.f32 %v1258, %v1347
        %v1349 = vpop.f32.mrb[0].mxu0
        %1350 = vdwg.mxu0
        %1351 = vmatprep.subr.mxu0 0.0
        %v1352 = vand.u32 %v1221, 4294901760
        %v1353 = vsub.f32 %v1221, %v1352
        %v1354 = vand.u32 %v1353, 4294901760
        %v1355 = vsub.f32 %v1353, %v1354
        %v1356 = vand.u32 %v1355, 4294901760
        %1357 = vmatpush1.msra.mxu0 %v1356
        %1358 = vmatprep.subr.mxu0 0.0
        %v1359 = vand.u32 %v1222, 4294901760
        %v1360 = vsub.f32 %v1222, %v1359
        %v1361 = vand.u32 %v1360, 4294901760
        %v1362 = vsub.f32 %v1360, %v1361
        %v1363 = vand.u32 %v1362, 4294901760
        %1364 = vmatpush1.msra.mxu0 %v1363
        %1365 = vmatprep.subr.mxu0 0.0
        %v1366 = vand.u32 %v1223, 4294901760
        %v1367 = vsub.f32 %v1223, %v1366
        %v1368 = vand.u32 %v1367, 4294901760
        %v1369 = vsub.f32 %v1367, %v1368
        %v1370 = vand.u32 %v1369, 4294901760
        %1371 = vmatpush1.msra.mxu0 %v1370
        %1372 = vmatprep.subr.mxu0 0.0
        %v1373 = vand.u32 %v1224, 4294901760
        %v1374 = vsub.f32 %v1224, %v1373
        %v1375 = vand.u32 %v1374, 4294901760
        %v1376 = vsub.f32 %v1374, %v1375
        %v1377 = vand.u32 %v1376, 4294901760
        %1378 = vmatpush1.msra.mxu0 %v1377
        %1379 = vmatprep.subr.mxu0 0.0
        %v1380 = vand.u32 %v1225, 4294901760
        %v1381 = vsub.f32 %v1225, %v1380
        %v1382 = vand.u32 %v1381, 4294901760
        %v1383 = vsub.f32 %v1381, %v1382
        %v1384 = vand.u32 %v1383, 4294901760
        %1385 = vmatpush1.msra.mxu0 %v1384
        %1386 = vmatprep.subr.mxu0 0.0
        %v1387 = vand.u32 %v1226, 4294901760
        %v1388 = vsub.f32 %v1226, %v1387
        %v1389 = vand.u32 %v1388, 4294901760
        %v1390 = vsub.f32 %v1388, %v1389
        %v1391 = vand.u32 %v1390, 4294901760
        %1392 = vmatpush1.msra.mxu0 %v1391
        %1393 = vmatprep.subr.mxu0 0.0
        %v1394 = vand.u32 %v1227, 4294901760
        %v1395 = vsub.f32 %v1227, %v1394
        %v1396 = vand.u32 %v1395, 4294901760
        %v1397 = vsub.f32 %v1395, %v1396
        %v1398 = vand.u32 %v1397, 4294901760
        %1399 = vmatpush1.msra.mxu0 %v1398
        %1400 = vmatprep.subr.mxu0 0.0
        %v1401 = vand.u32 %v1228, 4294901760
        %v1402 = vsub.f32 %v1228, %v1401
        %v1403 = vand.u32 %v1402, 4294901760
        %v1404 = vsub.f32 %v1402, %v1403
        %v1405 = vand.u32 %v1404, 4294901760
        %1406 = vmatpush1.msra.mxu0 %v1405
        %1407 = vmatprep.subr.mxu0 0.0
        %v1408 = vand.u32 %v1229, 4294901760
        %v1409 = vsub.f32 %v1229, %v1408
        %v1410 = vand.u32 %v1409, 4294901760
        %v1411 = vsub.f32 %v1409, %v1410
        %v1412 = vand.u32 %v1411, 4294901760
        %1413 = vmatpush1.msra.mxu0 %v1412
        %1414 = vmatprep.subr.mxu0 0.0
        %v1415 = vand.u32 %v1230, 4294901760
        %v1416 = vsub.f32 %v1230, %v1415
        %v1417 = vand.u32 %v1416, 4294901760
        %v1418 = vsub.f32 %v1416, %v1417
        %v1419 = vand.u32 %v1418, 4294901760
        %1420 = vmatpush1.msra.mxu0 %v1419
        %1421 = vmatprep.subr.mxu0 0.0
        %v1422 = vand.u32 %v1231, 4294901760
        %v1423 = vsub.f32 %v1231, %v1422
        %v1424 = vand.u32 %v1423, 4294901760
        %v1425 = vsub.f32 %v1423, %v1424
        %v1426 = vand.u32 %v1425, 4294901760
        %1427 = vmatpush1.msra.mxu0 %v1426
        %1428 = vmatprep.subr.mxu0 0.0
        %v1429 = vand.u32 %v1232, 4294901760
        %v1430 = vsub.f32 %v1232, %v1429
        %v1431 = vand.u32 %v1430, 4294901760
        %v1432 = vsub.f32 %v1430, %v1431
        %v1433 = vand.u32 %v1432, 4294901760
        %1434 = vmatpush1.msra.mxu0 %v1433
        %1435 = vmatprep.subr.mxu0 0.0
        %v1436 = vand.u32 %v1233, 4294901760
        %v1437 = vsub.f32 %v1233, %v1436
        %v1438 = vand.u32 %v1437, 4294901760
        %v1439 = vsub.f32 %v1437, %v1438
        %v1440 = vand.u32 %v1439, 4294901760
        %1441 = vmatpush1.msra.mxu0 %v1440
        %1442 = vmatprep.subr.mxu0 0.0
        %v1443 = vand.u32 %v1234, 4294901760
        %v1444 = vsub.f32 %v1234, %v1443
        %v1445 = vand.u32 %v1444, 4294901760
        %v1446 = vsub.f32 %v1444, %v1445
        %v1447 = vand.u32 %v1446, 4294901760
        %1448 = vmatpush1.msra.mxu0 %v1447
        %1449 = vmatprep.subr.mxu0 0.0
        %v1450 = vand.u32 %v1235, 4294901760
        %v1451 = vsub.f32 %v1235, %v1450
        %v1452 = vand.u32 %v1451, 4294901760
        %v1453 = vsub.f32 %v1451, %v1452
        %v1454 = vand.u32 %v1453, 4294901760
        %1455 = vmatpush1.msra.mxu0 %v1454
        %1456 = vmatprep.subr.mxu0 0.0
        %v1457 = vand.u32 %v1236, 4294901760
        %v1458 = vsub.f32 %v1236, %v1457
        %v1459 = vand.u32 %v1458, 4294901760
        %v1460 = vsub.f32 %v1458, %v1459
        %v1461 = vand.u32 %v1460, 4294901760
        %1462 = vmatpush1.msra.mxu0 %v1461
        %1463 = vmatprep.subr.mxu0 0.0
        %1464 = vmatpush1.msra.mxu0 0.0
        %1465 = vmatprep.subr.mxu0 0.0
        %1466 = vmatpush1.msra.mxu0 0.0
        %1467 = vmatprep.subr.mxu0 0.0
        %1468 = vmatpush1.msra.mxu0 0.0
        %1469 = vmatprep.subr.mxu0 0.0
        %1470 = vmatpush1.msra.mxu0 0.0
        %1471 = vmatprep.subr.mxu0 0.0
        %1472 = vmatpush1.msra.mxu0 0.0
        %1473 = vmatprep.subr.mxu0 0.0
        %1474 = vmatpush1.msra.mxu0 0.0
        %1475 = vmatprep.subr.mxu0 0.0
        %1476 = vmatpush1.msra.mxu0 0.0
        %1477 = vmatprep.subr.mxu0 0.0
        %1478 = vmatpush1.msra.mxu0 0.0
        %1479 = vmatprep.subr.mxu0 0.0
        %1480 = vmatpush1.msra.mxu0 0.0
        %1481 = vmatprep.subr.mxu0 0.0
        %1482 = vmatpush1.msra.mxu0 0.0
        %1483 = vmatprep.subr.mxu0 0.0
        %1484 = vmatpush1.msra.mxu0 0.0
        %1485 = vmatprep.subr.mxu0 0.0
        %1486 = vmatpush1.msra.mxu0 0.0
        %1487 = vmatprep.subr.mxu0 0.0
        %1488 = vmatpush1.msra.mxu0 0.0
        %1489 = vmatprep.subr.mxu0 0.0
        %1490 = vmatpush1.msra.mxu0 0.0
        %1491 = vmatprep.subr.mxu0 0.0
        %1492 = vmatpush1.msra.mxu0 0.0
        %1493 = vmatprep.subr.mxu0 0.0
        %1494 = vmatpush1.msra.mxu0 0.0
        %1495 = vmatprep.mubr.f32.mxu0 0.0
        %v1496 = vand.u32 %v1220, 4294901760
        %1497 = vmatmul.mubr.f32.gmra.mrb[0].mxu0 %v1496
        %v1498 = vpop.f32.mrb[0].mxu0
        %v1499 = vadd.f32 %v1348, %v1498
        %v1500 = vpop.f32.mrb[0].mxu0
        %1501 = vdwg.mxu0
        %1502 = vmatprep.subr.mxu0 0.0
        %v1503 = vand.u32 %v1221, 4294901760
        %v1504 = vsub.f32 %v1221, %v1503
        %1505 = vmatpush1.msra.mxu0 %v1504
        %1506 = vmatprep.subr.mxu0 0.0
        %v1507 = vand.u32 %v1222, 4294901760
        %v1508 = vsub.f32 %v1222, %v1507
        %1509 = vmatpush1.msra.mxu0 %v1508
        %1510 = vmatprep.subr.mxu0 0.0
        %v1511 = vand.u32 %v1223, 4294901760
        %v1512 = vsub.f32 %v1223, %v1511
        %1513 = vmatpush1.msra.mxu0 %v1512
        %1514 = vmatprep.subr.mxu0 0.0
        %v1515 = vand.u32 %v1224, 4294901760
        %v1516 = vsub.f32 %v1224, %v1515
        %1517 = vmatpush1.msra.mxu0 %v1516
        %1518 = vmatprep.subr.mxu0 0.0
        %v1519 = vand.u32 %v1225, 4294901760
        %v1520 = vsub.f32 %v1225, %v1519
        %1521 = vmatpush1.msra.mxu0 %v1520
        %1522 = vmatprep.subr.mxu0 0.0
        %v1523 = vand.u32 %v1226, 4294901760
        %v1524 = vsub.f32 %v1226, %v1523
        %1525 = vmatpush1.msra.mxu0 %v1524
        %1526 = vmatprep.subr.mxu0 0.0
        %v1527 = vand.u32 %v1227, 4294901760
        %v1528 = vsub.f32 %v1227, %v1527
        %1529 = vmatpush1.msra.mxu0 %v1528
        %1530 = vmatprep.subr.mxu0 0.0
        %v1531 = vand.u32 %v1228, 4294901760
        %v1532 = vsub.f32 %v1228, %v1531
        %1533 = vmatpush1.msra.mxu0 %v1532
        %1534 = vmatprep.subr.mxu0 0.0
        %v1535 = vand.u32 %v1229, 4294901760
        %v1536 = vsub.f32 %v1229, %v1535
        %1537 = vmatpush1.msra.mxu0 %v1536
        %1538 = vmatprep.subr.mxu0 0.0
        %v1539 = vand.u32 %v1230, 4294901760
        %v1540 = vsub.f32 %v1230, %v1539
        %1541 = vmatpush1.msra.mxu0 %v1540
        %1542 = vmatprep.subr.mxu0 0.0
        %v1543 = vand.u32 %v1231, 4294901760
        %v1544 = vsub.f32 %v1231, %v1543
        %1545 = vmatpush1.msra.mxu0 %v1544
        %1546 = vmatprep.subr.mxu0 0.0
        %v1547 = vand.u32 %v1232, 4294901760
        %v1548 = vsub.f32 %v1232, %v1547
        %1549 = vmatpush1.msra.mxu0 %v1548
        %1550 = vmatprep.subr.mxu0 0.0
        %v1551 = vand.u32 %v1233, 4294901760
        %v1552 = vsub.f32 %v1233, %v1551
        %1553 = vmatpush1.msra.mxu0 %v1552
        %1554 = vmatprep.subr.mxu0 0.0
        %v1555 = vand.u32 %v1234, 4294901760
        %v1556 = vsub.f32 %v1234, %v1555
        %1557 = vmatpush1.msra.mxu0 %v1556
        %1558 = vmatprep.subr.mxu0 0.0
        %v1559 = vand.u32 %v1235, 4294901760
        %v1560 = vsub.f32 %v1235, %v1559
        %1561 = vmatpush1.msra.mxu0 %v1560
        %1562 = vmatprep.subr.mxu0 0.0
        %v1563 = vand.u32 %v1236, 4294901760
        %v1564 = vsub.f32 %v1236, %v1563
        %1565 = vmatpush1.msra.mxu0 %v1564
        %1566 = vmatprep.subr.mxu0 0.0
        %1567 = vmatpush1.msra.mxu0 0.0
        %1568 = vmatprep.subr.mxu0 0.0
        %1569 = vmatpush1.msra.mxu0 0.0
        %1570 = vmatprep.subr.mxu0 0.0
        %1571 = vmatpush1.msra.mxu0 0.0
        %1572 = vmatprep.subr.mxu0 0.0
        %1573 = vmatpush1.msra.mxu0 0.0
        %1574 = vmatprep.subr.mxu0 0.0
        %1575 = vmatpush1.msra.mxu0 0.0
        %1576 = vmatprep.subr.mxu0 0.0
        %1577 = vmatpush1.msra.mxu0 0.0
        %1578 = vmatprep.subr.mxu0 0.0
        %1579 = vmatpush1.msra.mxu0 0.0
        %1580 = vmatprep.subr.mxu0 0.0
        %1581 = vmatpush1.msra.mxu0 0.0
        %1582 = vmatprep.subr.mxu0 0.0
        %1583 = vmatpush1.msra.mxu0 0.0
        %1584 = vmatprep.subr.mxu0 0.0
        %1585 = vmatpush1.msra.mxu0 0.0
        %1586 = vmatprep.subr.mxu0 0.0
        %1587 = vmatpush1.msra.mxu0 0.0
        %1588 = vmatprep.subr.mxu0 0.0
        %1589 = vmatpush1.msra.mxu0 0.0
        %1590 = vmatprep.subr.mxu0 0.0
        %1591 = vmatpush1.msra.mxu0 0.0
        %1592 = vmatprep.subr.mxu0 0.0
        %1593 = vmatpush1.msra.mxu0 0.0
        %1594 = vmatprep.subr.mxu0 0.0
        %1595 = vmatpush1.msra.mxu0 0.0
        %1596 = vmatprep.subr.mxu0 0.0
        %1597 = vmatpush1.msra.mxu0 0.0
        %1598 = vmatprep.mubr.f32.mxu0 0.0
        %v1599 = vand.u32 %v1220, 4294901760
        %v1600 = vsub.f32 %v1220, %v1599
        %1601 = vmatmul.mubr.f32.gmra.mrb[0].mxu0 %v1600
        %v1602 = vpop.f32.mrb[0].mxu0
        %v1603 = vadd.f32 %v1499, %v1602
        %v1604 = vpop.f32.mrb[0].mxu0
        %1605 = vdwg.mxu0
        %1606 = vmatprep.subr.mxu0 0.0
        %v1607 = vand.u32 %v1221, 4294901760
        %1608 = vmatpush1.msra.mxu0 %v1607
        %1609 = vmatprep.subr.mxu0 0.0
        %v1610 = vand.u32 %v1222, 4294901760
        %1611 = vmatpush1.msra.mxu0 %v1610
        %1612 = vmatprep.subr.mxu0 0.0
        %v1613 = vand.u32 %v1223, 4294901760
        %1614 = vmatpush1.msra.mxu0 %v1613
        %1615 = vmatprep.subr.mxu0 0.0
        %v1616 = vand.u32 %v1224, 4294901760
        %1617 = vmatpush1.msra.mxu0 %v1616
        %1618 = vmatprep.subr.mxu0 0.0
        %v1619 = vand.u32 %v1225, 4294901760
        %1620 = vmatpush1.msra.mxu0 %v1619
        %1621 = vmatprep.subr.mxu0 0.0
        %v1622 = vand.u32 %v1226, 4294901760
        %1623 = vmatpush1.msra.mxu0 %v1622
        %1624 = vmatprep.subr.mxu0 0.0
        %v1625 = vand.u32 %v1227, 4294901760
        %1626 = vmatpush1.msra.mxu0 %v1625
        %1627 = vmatprep.subr.mxu0 0.0
        %v1628 = vand.u32 %v1228, 4294901760
        %1629 = vmatpush1.msra.mxu0 %v1628
        %1630 = vmatprep.subr.mxu0 0.0
        %v1631 = vand.u32 %v1229, 4294901760
        %1632 = vmatpush1.msra.mxu0 %v1631
        %1633 = vmatprep.subr.mxu0 0.0
        %v1634 = vand.u32 %v1230, 4294901760
        %1635 = vmatpush1.msra.mxu0 %v1634
        %1636 = vmatprep.subr.mxu0 0.0
        %v1637 = vand.u32 %v1231, 4294901760
        %1638 = vmatpush1.msra.mxu0 %v1637
        %1639 = vmatprep.subr.mxu0 0.0
        %v1640 = vand.u32 %v1232, 4294901760
        %1641 = vmatpush1.msra.mxu0 %v1640
        %1642 = vmatprep.subr.mxu0 0.0
        %v1643 = vand.u32 %v1233, 4294901760
        %1644 = vmatpush1.msra.mxu0 %v1643
        %1645 = vmatprep.subr.mxu0 0.0
        %v1646 = vand.u32 %v1234, 4294901760
        %1647 = vmatpush1.msra.mxu0 %v1646
        %1648 = vmatprep.subr.mxu0 0.0
        %v1649 = vand.u32 %v1235, 4294901760
        %1650 = vmatpush1.msra.mxu0 %v1649
        %1651 = vmatprep.subr.mxu0 0.0
        %v1652 = vand.u32 %v1236, 4294901760
        %1653 = vmatpush1.msra.mxu0 %v1652
        %1654 = vmatprep.subr.mxu0 0.0
        %1655 = vmatpush1.msra.mxu0 0.0
        %1656 = vmatprep.subr.mxu0 0.0
        %1657 = vmatpush1.msra.mxu0 0.0
        %1658 = vmatprep.subr.mxu0 0.0
        %1659 = vmatpush1.msra.mxu0 0.0
        %1660 = vmatprep.subr.mxu0 0.0
        %1661 = vmatpush1.msra.mxu0 0.0
        %1662 = vmatprep.subr.mxu0 0.0
        %1663 = vmatpush1.msra.mxu0 0.0
        %1664 = vmatprep.subr.mxu0 0.0
        %1665 = vmatpush1.msra.mxu0 0.0
        %1666 = vmatprep.subr.mxu0 0.0
        %1667 = vmatpush1.msra.mxu0 0.0
        %1668 = vmatprep.subr.mxu0 0.0
        %1669 = vmatpush1.msra.mxu0 0.0
        %1670 = vmatprep.subr.mxu0 0.0
        %1671 = vmatpush1.msra.mxu0 0.0
        %1672 = vmatprep.subr.mxu0 0.0
        %1673 = vmatpush1.msra.mxu0 0.0
        %1674 = vmatprep.subr.mxu0 0.0
        %1675 = vmatpush1.msra.mxu0 0.0
        %1676 = vmatprep.subr.mxu0 0.0
        %1677 = vmatpush1.msra.mxu0 0.0
        %1678 = vmatprep.subr.mxu0 0.0
        %1679 = vmatpush1.msra.mxu0 0.0
        %1680 = vmatprep.subr.mxu0 0.0
        %1681 = vmatpush1.msra.mxu0 0.0
        %1682 = vmatprep.subr.mxu0 0.0
        %1683 = vmatpush1.msra.mxu0 0.0
        %1684 = vmatprep.subr.mxu0 0.0
        %1685 = vmatpush1.msra.mxu0 0.0
        %1686 = vmatprep.mubr.f32.mxu0 0.0
        %v1687 = vand.u32 %v1220, 4294901760
        %v1688 = vsub.f32 %v1220, %v1687
        %v1689 = vand.u32 %v1688, 4294901760
        %1690 = vmatmul.mubr.f32.gmra.mrb[0].mxu0 %v1689
        %v1691 = vpop.f32.mrb[0].mxu0
        %v1692 = vadd.f32 %v1603, %v1691
        %v1693 = vpop.f32.mrb[0].mxu0
        %1694 = vdwg.mxu0
        %1695 = vmatprep.subr.mxu0 0.0
        %v1696 = vand.u32 %v1221, 4294901760
        %v1697 = vsub.f32 %v1221, %v1696
        %v1698 = vand.u32 %v1697, 4294901760
        %1699 = vmatpush1.msra.mxu0 %v1698
        %1700 = vmatprep.subr.mxu0 0.0
        %v1701 = vand.u32 %v1222, 4294901760
        %v1702 = vsub.f32 %v1222, %v1701
        %v1703 = vand.u32 %v1702, 4294901760
        %1704 = vmatpush1.msra.mxu0 %v1703
        %1705 = vmatprep.subr.mxu0 0.0
        %v1706 = vand.u32 %v1223, 4294901760
        %v1707 = vsub.f32 %v1223, %v1706
        %v1708 = vand.u32 %v1707, 4294901760
        %1709 = vmatpush1.msra.mxu0 %v1708
        %1710 = vmatprep.subr.mxu0 0.0
        %v1711 = vand.u32 %v1224, 4294901760
        %v1712 = vsub.f32 %v1224, %v1711
        %v1713 = vand.u32 %v1712, 4294901760
        %1714 = vmatpush1.msra.mxu0 %v1713
        %1715 = vmatprep.subr.mxu0 0.0
        %v1716 = vand.u32 %v1225, 4294901760
        %v1717 = vsub.f32 %v1225, %v1716
        %v1718 = vand.u32 %v1717, 4294901760
        %1719 = vmatpush1.msra.mxu0 %v1718
        %1720 = vmatprep.subr.mxu0 0.0
        %v1721 = vand.u32 %v1226, 4294901760
        %v1722 = vsub.f32 %v1226, %v1721
        %v1723 = vand.u32 %v1722, 4294901760
        %1724 = vmatpush1.msra.mxu0 %v1723
        %1725 = vmatprep.subr.mxu0 0.0
        %v1726 = vand.u32 %v1227, 4294901760
        %v1727 = vsub.f32 %v1227, %v1726
        %v1728 = vand.u32 %v1727, 4294901760
        %1729 = vmatpush1.msra.mxu0 %v1728
        %1730 = vmatprep.subr.mxu0 0.0
        %v1731 = vand.u32 %v1228, 4294901760
        %v1732 = vsub.f32 %v1228, %v1731
        %v1733 = vand.u32 %v1732, 4294901760
        %1734 = vmatpush1.msra.mxu0 %v1733
        %1735 = vmatprep.subr.mxu0 0.0
        %v1736 = vand.u32 %v1229, 4294901760
        %v1737 = vsub.f32 %v1229, %v1736
        %v1738 = vand.u32 %v1737, 4294901760
        %1739 = vmatpush1.msra.mxu0 %v1738
        %1740 = vmatprep.subr.mxu0 0.0
        %v1741 = vand.u32 %v1230, 4294901760
        %v1742 = vsub.f32 %v1230, %v1741
        %v1743 = vand.u32 %v1742, 4294901760
        %1744 = vmatpush1.msra.mxu0 %v1743
        %1745 = vmatprep.subr.mxu0 0.0
        %v1746 = vand.u32 %v1231, 4294901760
        %v1747 = vsub.f32 %v1231, %v1746
        %v1748 = vand.u32 %v1747, 4294901760
        %1749 = vmatpush1.msra.mxu0 %v1748
        %1750 = vmatprep.subr.mxu0 0.0
        %v1751 = vand.u32 %v1232, 4294901760
        %v1752 = vsub.f32 %v1232, %v1751
        %v1753 = vand.u32 %v1752, 4294901760
        %1754 = vmatpush1.msra.mxu0 %v1753
        %1755 = vmatprep.subr.mxu0 0.0
        %v1756 = vand.u32 %v1233, 4294901760
        %v1757 = vsub.f32 %v1233, %v1756
        %v1758 = vand.u32 %v1757, 4294901760
        %1759 = vmatpush1.msra.mxu0 %v1758
        %1760 = vmatprep.subr.mxu0 0.0
        %v1761 = vand.u32 %v1234, 4294901760
        %v1762 = vsub.f32 %v1234, %v1761
        %v1763 = vand.u32 %v1762, 4294901760
        %1764 = vmatpush1.msra.mxu0 %v1763
        %1765 = vmatprep.subr.mxu0 0.0
        %v1766 = vand.u32 %v1235, 4294901760
        %v1767 = vsub.f32 %v1235, %v1766
        %v1768 = vand.u32 %v1767, 4294901760
        %1769 = vmatpush1.msra.mxu0 %v1768
        %1770 = vmatprep.subr.mxu0 0.0
        %v1771 = vand.u32 %v1236, 4294901760
        %v1772 = vsub.f32 %v1236, %v1771
        %v1773 = vand.u32 %v1772, 4294901760
        %1774 = vmatpush1.msra.mxu0 %v1773
        %1775 = vmatprep.subr.mxu0 0.0
        %1776 = vmatpush1.msra.mxu0 0.0
        %1777 = vmatprep.subr.mxu0 0.0
        %1778 = vmatpush1.msra.mxu0 0.0
        %1779 = vmatprep.subr.mxu0 0.0
        %1780 = vmatpush1.msra.mxu0 0.0
        %1781 = vmatprep.subr.mxu0 0.0
        %1782 = vmatpush1.msra.mxu0 0.0
        %1783 = vmatprep.subr.mxu0 0.0
        %1784 = vmatpush1.msra.mxu0 0.0
        %1785 = vmatprep.subr.mxu0 0.0
        %1786 = vmatpush1.msra.mxu0 0.0
        %1787 = vmatprep.subr.mxu0 0.0
        %1788 = vmatpush1.msra.mxu0 0.0
        %1789 = vmatprep.subr.mxu0 0.0
        %1790 = vmatpush1.msra.mxu0 0.0
        %1791 = vmatprep.subr.mxu0 0.0
        %1792 = vmatpush1.msra.mxu0 0.0
        %1793 = vmatprep.subr.mxu0 0.0
        %1794 = vmatpush1.msra.mxu0 0.0
        %1795 = vmatprep.subr.mxu0 0.0
        %1796 = vmatpush1.msra.mxu0 0.0
        %1797 = vmatprep.subr.mxu0 0.0
        %1798 = vmatpush1.msra.mxu0 0.0
        %1799 = vmatprep.subr.mxu0 0.0
        %1800 = vmatpush1.msra.mxu0 0.0
        %1801 = vmatprep.subr.mxu0 0.0
        %1802 = vmatpush1.msra.mxu0 0.0
        %1803 = vmatprep.subr.mxu0 0.0
        %1804 = vmatpush1.msra.mxu0 0.0
        %1805 = vmatprep.subr.mxu0 0.0
        %1806 = vmatpush1.msra.mxu0 0.0
        %1807 = vmatprep.mubr.f32.mxu0 0.0
        %v1808 = vand.u32 %v1220, 4294901760
        %1809 = vmatmul.mubr.f32.gmra.mrb[0].mxu0 %v1808
        %v1810 = vpop.f32.mrb[0].mxu0
        %v1811 = vadd.f32 %v1692, %v1810
        %v1812 = vpop.f32.mrb[0].mxu0
        %1813 = vdwg.mxu0
        %1814 = vmatprep.subr.mxu0 0.0
        %v1815 = vand.u32 %v1221, 4294901760
        %1816 = vmatpush1.msra.mxu0 %v1815
        %1817 = vmatprep.subr.mxu0 0.0
        %v1818 = vand.u32 %v1222, 4294901760
        %1819 = vmatpush1.msra.mxu0 %v1818
        %1820 = vmatprep.subr.mxu0 0.0
        %v1821 = vand.u32 %v1223, 4294901760
        %1822 = vmatpush1.msra.mxu0 %v1821
        %1823 = vmatprep.subr.mxu0 0.0
        %v1824 = vand.u32 %v1224, 4294901760
        %1825 = vmatpush1.msra.mxu0 %v1824
        %1826 = vmatprep.subr.mxu0 0.0
        %v1827 = vand.u32 %v1225, 4294901760
        %1828 = vmatpush1.msra.mxu0 %v1827
        %1829 = vmatprep.subr.mxu0 0.0
        %v1830 = vand.u32 %v1226, 4294901760
        %1831 = vmatpush1.msra.mxu0 %v1830
        %1832 = vmatprep.subr.mxu0 0.0
        %v1833 = vand.u32 %v1227, 4294901760
        %1834 = vmatpush1.msra.mxu0 %v1833
        %1835 = vmatprep.subr.mxu0 0.0
        %v1836 = vand.u32 %v1228, 4294901760
        %1837 = vmatpush1.msra.mxu0 %v1836
        %1838 = vmatprep.subr.mxu0 0.0
        %v1839 = vand.u32 %v1229, 4294901760
        %1840 = vmatpush1.msra.mxu0 %v1839
        %1841 = vmatprep.subr.mxu0 0.0
        %v1842 = vand.u32 %v1230, 4294901760
        %1843 = vmatpush1.msra.mxu0 %v1842
        %1844 = vmatprep.subr.mxu0 0.0
        %v1845 = vand.u32 %v1231, 4294901760
        %1846 = vmatpush1.msra.mxu0 %v1845
        %1847 = vmatprep.subr.mxu0 0.0
        %v1848 = vand.u32 %v1232, 4294901760
        %1849 = vmatpush1.msra.mxu0 %v1848
        %1850 = vmatprep.subr.mxu0 0.0
        %v1851 = vand.u32 %v1233, 4294901760
        %1852 = vmatpush1.msra.mxu0 %v1851
        %1853 = vmatprep.subr.mxu0 0.0
        %v1854 = vand.u32 %v1234, 4294901760
        %1855 = vmatpush1.msra.mxu0 %v1854
        %1856 = vmatprep.subr.mxu0 0.0
        %v1857 = vand.u32 %v1235, 4294901760
        %1858 = vmatpush1.msra.mxu0 %v1857
        %1859 = vmatprep.subr.mxu0 0.0
        %v1860 = vand.u32 %v1236, 4294901760
        %1861 = vmatpush1.msra.mxu0 %v1860
        %1862 = vmatprep.subr.mxu0 0.0
        %1863 = vmatpush1.msra.mxu0 0.0
        %1864 = vmatprep.subr.mxu0 0.0
        %1865 = vmatpush1.msra.mxu0 0.0
        %1866 = vmatprep.subr.mxu0 0.0
        %1867 = vmatpush1.msra.mxu0 0.0
        %1868 = vmatprep.subr.mxu0 0.0
        %1869 = vmatpush1.msra.mxu0 0.0
        %1870 = vmatprep.subr.mxu0 0.0
        %1871 = vmatpush1.msra.mxu0 0.0
        %1872 = vmatprep.subr.mxu0 0.0
        %1873 = vmatpush1.msra.mxu0 0.0
        %1874 = vmatprep.subr.mxu0 0.0
        %1875 = vmatpush1.msra.mxu0 0.0
        %1876 = vmatprep.subr.mxu0 0.0
        %1877 = vmatpush1.msra.mxu0 0.0
        %1878 = vmatprep.subr.mxu0 0.0
        %1879 = vmatpush1.msra.mxu0 0.0
        %1880 = vmatprep.subr.mxu0 0.0
        %1881 = vmatpush1.msra.mxu0 0.0
        %1882 = vmatprep.subr.mxu0 0.0
        %1883 = vmatpush1.msra.mxu0 0.0
        %1884 = vmatprep.subr.mxu0 0.0
        %1885 = vmatpush1.msra.mxu0 0.0
        %1886 = vmatprep.subr.mxu0 0.0
        %1887 = vmatpush1.msra.mxu0 0.0
        %1888 = vmatprep.subr.mxu0 0.0
        %1889 = vmatpush1.msra.mxu0 0.0
        %1890 = vmatprep.subr.mxu0 0.0
        %1891 = vmatpush1.msra.mxu0 0.0
        %1892 = vmatprep.subr.mxu0 0.0
        %1893 = vmatpush1.msra.mxu0 0.0
        %1894 = vmatprep.mubr.f32.mxu0 0.0
        %v1895 = vand.u32 %v1220, 4294901760
        %1896 = vmatmul.mubr.f32.gmra.mrb[0].mxu0 %v1895
        %v1897 = vpop.f32.mrb[0].mxu0
        %v1898 = vadd.f32 %v1811, %v1897
        %v1899 = vpop.f32.mrb[0].mxu0
        %1900 = vdwg.mxu0
        %v1901 = vmul.f32 %v1244, %v1252
        %v1902 = vadd.f32 %v1901, %v1898
        %1903 = vst [vmem:[%s322] sm:$0xff] %v1902
        %s1904 = sand.u32 %s175, 1
        %s1905 = scalar_lea.sflag [#allocation4], %s1904
        %s1906 = sand.u32 %s175, 1
        %s1907 = smul.addr %s1906, 8
        %s1908 = scalar_lea.vmem [#allocation8], %s1907
        // Predicated region
        $region53: #{tpu_custom_call.1} parent=39 // pred_check
          %p1909 = pneg %p185
        $region54: #{tpu_custom_call.1} parent=39 // pred_check_branch
          %1911 = sbr.rel (%p1909) target = $region56
        $region55: #{tpu_custom_call.1} parent=39 // pred_region
          %s1913 = ssub.s32 128, 128
          %1914 = vsyncadd %s1905, %s1913
          %s1915 = sadd.s32 %s28, %s27
          %s1916 = smul.addr %s1915, 128
          %s1917 = scalar_lea.hbm %s5, %s1916
          %s1919 = sshll.u32 %s1908, 4
          %s1920 = int_to_ptr.vmem [resolvable:$true] %s1919
          %1922 = dma.vmem_to_hbm [thread:$0]  %s1920, 128, %s1917, %s1905
        $region56: #{tpu_custom_call.1} parent=39 // pred_fallthru
          _
      $region40: #{tpu_custom_call.1} parent=5 // pred_fallthru
        _
      %p1923 = scmp.le.s32.totalorder 2, %s18
      // Predicated region
      $region57: #{tpu_custom_call.1} parent=5 // pred_check
        %p1924 = pneg %p1923
      $region58: #{tpu_custom_call.1} parent=5 // pred_check_branch
        %1926 = sbr.rel (%p1924) target = $region60
      $region59: #{tpu_custom_call.1} parent=5 // pred_region
        %s1927 = ssub.s32 %s18, 2
        // Predicated region
        $region61: #{tpu_custom_call.1} parent=59 // pred_check
          %p1928 = pneg %p191
        $region62: #{tpu_custom_call.1} parent=59 // pred_check_branch
          %1930 = sbr.rel (%p1928) target = $region64
        $region63: #{tpu_custom_call.1} parent=59 // pred_region
          %s1931 = sand.u32 %s176, 1
          %s1932 = scalar_lea.sflag [#allocation4], %s1931
          %s1933 = sand.u32 %s176, 1
          %s1934 = smul.addr %s1933, 8
          %s1935 = scalar_lea.vmem [#allocation8], %s1934
          %1936 = dma.done %s1932, 128
        $region64: #{tpu_custom_call.1} parent=59 // pred_fallthru
          _
      $region60: #{tpu_custom_call.1} parent=5 // pred_fallthru
        _
    $region6: #{tpu_custom_call.1} parent=1 // loop_footer
      %s22 = sadd.s32 1, %s18
    $region7: #{tpu_custom_call.1} parent=1 // loop_footer_branch
      %17 = sbr.rel target = $region3
    $region8: #{tpu_custom_call.1} parent=1 // loop_exit
      _
    %1937 = vsyncpa [#allocation3], 1
    %s1938 = scalar_lea.sflag [#allocation3], 1
    %1939 = vsyncpa %s1938, 1
    %1940 = vsyncpa [#allocation6], 1
    %1941 = vsyncpa [#allocation4], 1
    %s1942 = scalar_lea.sflag [#allocation4], 1
    %1943 = vsyncpa %s1942, 1

</llo_original>
